<compile_context>
chip_gen: v5e
topology: v5e:2x2
jax: 0.10.0
libtpu: 0.0.40
codegen_flags: <defaults>
</compile_context>

<pallas_src>
import functools

import jax
import jax.numpy as jnp
from jax.experimental import pallas as pl
from jax.experimental.pallas import tpu as pltpu

LANE = 128
NEG_LARGE = -1.0e30  # masks padded logit columns out of the logsumexp
H1 = 256             # fc1 out
H2 = 768             # fc2 out == phoBert hidden
HCAT = H1 + H2 + 0   # (not used; kept for readability of bias packing below)


def _round_up(x, m):
    return (x + m - 1) // m * m


# ----------------------------------------------------------------------------
# Fused kernel (one batch tile per grid step):
#   relu(fc1) -> relu(fc2) -> (dropout = identity) ->
#   logits = cat(x_nn, x_phoBert) @ Wo + bo -> per-example cross-entropy.
# ----------------------------------------------------------------------------
def nn_fused_kernel(
    feat_ref,      # [tile_b, K_pad]          f32 (lane-padded features)
    pho_ref,       # [tile_b, 768]            bf16 (phoBert CLS stand-in)
    labels_ref,    # [tile_b, 1]              int32
    w1_ref,        # [K_pad, 256]             bf16 (fc1 weight^T, zero-padded rows)
    w2_ref,        # [256, 768]               bf16 (fc2 weight^T)
    wo_ref,        # [1536, C_pad]            bf16 (out weight^T, zero-padded cols)
    bias_ref,      # [1, 256 + 768 + C_pad]   f32  (b1 | b2 | bo, bo zero-padded)
    logits_ref,    # [tile_b, C_pad]          f32 out
    loss_ref,      # [tile_b, LANE]           f32 out (per-example loss, lane-bcast)
    *,
    num_classes,
    batch_size,
    tile_b,
):
    f32 = jnp.float32
    bf16 = jnp.bfloat16

    b1 = bias_ref[:, 0:H1]                   # [1, 256]
    b2 = bias_ref[:, H1:H1 + H2]             # [1, 768]
    bo = bias_ref[:, H1 + H2:]               # [1, C_pad]

    # x_nn = relu(fc1(features))  -- bf16 MXU operands, f32 accumulate.
    x = jnp.dot(feat_ref[...].astype(bf16), w1_ref[...], preferred_element_type=f32)
    x = jnp.maximum(x + b1, 0.0)

    # x_nn = relu(fc2(x_nn))
    x = jnp.dot(x.astype(bf16), w2_ref[...], preferred_element_type=f32)
    x = jnp.maximum(x + b2, 0.0)

    # dropout_nn / dropout_lm: identity at inference time.

    # logits = out(cat(x_nn, x_phoBert)) -- single matmul on the merged weight.
    xcat = jnp.concatenate([x.astype(bf16), pho_ref[...]], axis=1)   # [tile_b, 1536]
    logits = jnp.dot(xcat, wo_ref[...], preferred_element_type=f32) + bo
    logits_ref[...] = logits  # lane-dense [tile_b, C_pad] store; padded cols are bias 0.

    # CrossEntropyLoss per example: loss_b = logsumexp(logits_b) - logits_b[label_b]
    tb, c_pad = logits.shape
    col = jax.lax.broadcasted_iota(jnp.int32, (tb, c_pad), 1)
    valid_col = col < num_classes
    masked = jnp.where(valid_col, logits, NEG_LARGE)          # padded cols out of LSE

    m = jnp.max(masked, axis=1, keepdims=True)
    lse = m + jnp.log(jnp.sum(jnp.exp(masked - m), axis=1, keepdims=True))
    # TODO(synk): labels are assumed in [0, num_classes); PyTorch's ignore_index
    # (e.g. -100) is not handled.
    picked = jnp.sum(
        jnp.where(col == labels_ref[...], logits, 0.0), axis=1, keepdims=True
    )
    loss_pe = lse - picked

    # Zero out padded batch rows so the wrapper's sum/B mean is exact.
    row = jax.lax.broadcasted_iota(jnp.int32, (tb, 1), 0) + pl.program_id(0) * tile_b
    loss_pe = jnp.where(row < batch_size, loss_pe, 0.0)
    loss_ref[...] = jnp.broadcast_to(loss_pe, loss_ref.shape)


@functools.partial(jax.jit, static_argnames=("num_classes",))
def nn_forward(params, features, pho_cls, labels, *, num_classes):
    """Runs the fused Pallas kernel. Returns (logits [B, num_classes], mean loss)."""
    B, input_size = features.shape
    k_pad = params["w1_t"].shape[0]
    c_pad = params["wo_t"].shape[1]

    # Batch tile: multiple of 16 (bf16 sublane packing), capped at 128
    # (fills v5e's 128-row MXU; small enough to stay far below v7x's VMEM budget).
    tile_b = min(128, _round_up(max(B, 1), 16))
    b_pad = _round_up(B, tile_b)
    num_tiles = b_pad // tile_b

    # Pad streaming inputs (batch sublane + fc1 lane padding); labels padded with 0
    # (their loss contribution is masked out in-kernel).
    feat_p = jnp.zeros((b_pad, k_pad), jnp.float32).at[:B, :input_size].set(features)
    pho_p = jnp.zeros((b_pad, H2), jnp.bfloat16).at[:B].set(pho_cls.astype(jnp.bfloat16))
    lab_p = jnp.zeros((b_pad, 1), jnp.int32).at[:B, 0].set(labels.astype(jnp.int32))

    kernel = functools.partial(
        nn_fused_kernel, num_classes=num_classes, batch_size=B, tile_b=tile_b
    )
    bias_w = params["bias_packed"].shape[1]

    logits_pad, loss_pe = pl.pallas_call(
        kernel,
        out_shape=(
            jax.ShapeDtypeStruct((b_pad, c_pad), jnp.float32),
            jax.ShapeDtypeStruct((b_pad, LANE), jnp.float32),
        ),
        grid=(num_tiles,),
        in_specs=[
            # Streaming per-tile inputs.
            pl.BlockSpec((tile_b, k_pad), lambda i: (i, 0)),
            pl.BlockSpec((tile_b, H2), lambda i: (i, 0)),
            pl.BlockSpec((tile_b, 1), lambda i: (i, 0)),
            # VMEM-resident weights / packed bias (constant index_map -> DMA'd once).
            pl.BlockSpec((k_pad, H1), lambda i: (0, 0)),
            pl.BlockSpec((H1, H2), lambda i: (0, 0)),
            pl.BlockSpec((2 * H2, c_pad), lambda i: (0, 0)),
            pl.BlockSpec((1, bias_w), lambda i: (0, 0)),
        ],
        out_specs=(
            pl.BlockSpec((tile_b, c_pad), lambda i: (i, 0)),
            pl.BlockSpec((tile_b, LANE), lambda i: (i, 0)),
        ),
        compiler_params=pltpu.CompilerParams(
            dimension_semantics=("parallel",),  # shards batch tiles across v7x's 2 TCs
        ),
    )(
        feat_p,
        pho_p,
        lab_p,
        params["w1_t"],
        params["w2_t"],
        params["wo_t"],
        params["bias_packed"],
    )

    logits = logits_pad[:B, :num_classes]
    # Padded rows already contribute 0; single tiny reduce for the mean.
    loss = jnp.sum(loss_pe[:, 0]) / B
    return logits, loss


def init_params(key, input_size, num_classes):
    """Deterministic synthetic parameters matching the nn.Module shapes.

    Weights pre-transposed to [in, out] and stored bf16 (MXU operands); fc1
    contraction zero-padded to 128 lanes; class dim zero-padded to 128 lanes;
    all biases packed into one f32 row.
    """
    ks = jax.random.split(key, 6)
    c_pad = max(LANE, _round_up(num_classes, LANE))
    k_pad = max(LANE, _round_up(input_size, LANE))

    # PyTorch Linear stores weight as [out, in]; we keep the transposed form.
    w1 = jax.random.normal(ks[0], (H1, input_size), jnp.float32) * 0.05
    b1 = jax.random.normal(ks[1], (H1,), jnp.float32) * 0.01
    w2 = jax.random.normal(ks[2], (H2, H1), jnp.float32) * 0.05
    b2 = jax.random.normal(ks[3], (H2,), jnp.float32) * 0.01
    wo = jax.random.normal(ks[4], (num_classes, 2 * H2), jnp.float32) * 0.05
    bo = jax.random.normal(ks[5], (num_classes,), jnp.float32) * 0.01

    w1_t = jnp.zeros((k_pad, H1), jnp.float32).at[:input_size, :].set(w1.T)
    wo_t = jnp.zeros((2 * H2, c_pad), jnp.float32).at[:, :num_classes].set(wo.T)

    bias_packed = jnp.zeros((1, H1 + H2 + c_pad), jnp.float32)
    bias_packed = bias_packed.at[0, :H1].set(b1)
    bias_packed = bias_packed.at[0, H1:H1 + H2].set(b2)
    bias_packed = bias_packed.at[0, H1 + H2:H1 + H2 + num_classes].set(bo)

    return {
        "w1_t": w1_t.astype(jnp.bfloat16),   # [k_pad, 256] bf16
        "w2_t": w2.T.astype(jnp.bfloat16),   # [256, 768]   bf16
        "wo_t": wo_t.astype(jnp.bfloat16),   # [1536, c_pad] bf16
        "bias_packed": bias_packed,          # [1, 256+768+c_pad] f32
    }


def phobert_cls_standin(key, input_ids, token_type_ids, attention_mask, vocab_size=64):
    """Deterministic stand-in for phoBert(...).last_hidden_state[:, 0, :]."""
    # TODO(synk): the real phoBert ('gechim/phobert-base-v2-finetuned') is a
    # pretrained transformer checkpoint and is not reproducible here; this
    # stand-in only embeds the CLS position (token 0).
    del token_type_ids, attention_mask
    emb_table = jax.random.normal(key, (vocab_size, H2), jnp.float32) * 0.02
    return emb_table[input_ids[:, 0]].astype(jnp.bfloat16)  # [B, 768] bf16


def _reference_forward(params, features, pho_cls, labels, num_classes):
    """Pure-JAX reference using the same bf16-stored weights (f32 math)."""
    B, input_size = features.shape
    w1 = params["w1_t"].astype(jnp.float32)[:input_size, :]
    w2 = params["w2_t"].astype(jnp.float32)
    wo = params["wo_t"].astype(jnp.float32)[:, :num_classes]
    bias = params["bias_packed"][0]
    b1, b2, bo = bias[:H1], bias[H1:H1 + H2], bias[H1 + H2:H1 + H2 + num_classes]

    x = jnp.maximum(features @ w1 + b1, 0.0)
    x = jnp.maximum(x @ w2 + b2, 0.0)
    xcat = jnp.concatenate([x, pho_cls.astype(jnp.float32)], axis=1)
    logits = xcat @ wo + bo
    lse = jax.nn.logsumexp(logits, axis=1)
    picked = jnp.take_along_axis(logits, labels[:, None].astype(jnp.int32), axis=1)[:, 0]
    return logits, jnp.mean(lse - picked)


if __name__ == "__main__":
    B = 8
    INPUT_SIZE = 32
    SEQ = 8
    NUM_CLASSES = 4
    VOCAB = 64

    root = jax.random.PRNGKey(0)
    k_param, k_emb, k_feat, k_ids, k_lab = jax.random.split(root, 5)

    params = init_params(k_param, INPUT_SIZE, NUM_CLASSES)

    features = jax.random.normal(k_feat, (B, INPUT_SIZE), jnp.float32)
    input_ids = jax.random.randint(k_ids, (B, SEQ), 0, VOCAB, dtype=jnp.int32)
    token_type_ids = jnp.zeros((B, SEQ), jnp.int32)
    attention_mask = jnp.ones((B, SEQ), jnp.int32)
    labels = jax.random.randint(k_lab, (B,), 0, NUM_CLASSES, dtype=jnp.int32)

    pho_cls = phobert_cls_standin(k_emb, input_ids, token_type_ids, attention_mask, VOCAB)

    logits, loss = nn_forward(params, features, pho_cls, labels, num_classes=NUM_CLASSES)
    jax.block_until_ready((logits, loss))

    assert logits.shape == (B, NUM_CLASSES)
    assert loss.shape == ()
    assert bool(jnp.isfinite(loss)) and bool(jnp.all(jnp.isfinite(logits)))

    # Loose-tolerance parity check vs a pure-JAX reference (bf16 matmul operands
    # in the kernel vs f32 math in the reference).
    ref_logits, ref_loss = _reference_forward(params, features, pho_cls, labels, NUM_CLASSES)
    assert bool(jnp.allclose(logits, ref_logits, atol=5e-2, rtol=5e-2)), "logits mismatch"
    assert bool(jnp.allclose(loss, ref_loss, atol=5e-2, rtol=5e-2)), "loss mismatch"

    print("KERNEL_OK")
</pallas_src>

<mosaic_0001>
module attributes {stable_mosaic.version = 11 : i64} {
  func.func @nn_fused_kernel(%arg0: i32, %arg1: memref<16x128xf32, #tpu.memory_space<vmem>>, %arg2: memref<16x768xbf16, #tpu.memory_space<vmem>>, %arg3: memref<16x1xi32, #tpu.memory_space<vmem>>, %arg4: memref<128x256xbf16, #tpu.memory_space<vmem>>, %arg5: memref<256x768xbf16, #tpu.memory_space<vmem>>, %arg6: memref<1536x128xbf16, #tpu.memory_space<vmem>>, %arg7: memref<1x1152xf32, #tpu.memory_space<vmem>>, %arg8: memref<16x128xf32, #tpu.memory_space<vmem>>, %arg9: memref<16x128xf32, #tpu.memory_space<vmem>>) attributes {dimension_semantics = [#tpu.dimension_semantics<parallel>], iteration_bounds = array<i64: 1>, scalar_prefetch = 0 : i64, scratch_operands = 0 : i64, tpu.core_type = #tpu.core_type<tc>, window_params = [{transform_indices = @transform_0, window_bounds = array<i64: 16, 128>}, {transform_indices = @transform_1, window_bounds = array<i64: 16, 768>}, {transform_indices = @transform_2, window_bounds = array<i64: 16, 1>}, {pipeline_mode = #tpu.pipeline_mode<synchronous>, transform_indices = @transform_3, window_bounds = array<i64: 128, 256>}, {pipeline_mode = #tpu.pipeline_mode<synchronous>, transform_indices = @transform_4, window_bounds = array<i64: 256, 768>}, {pipeline_mode = #tpu.pipeline_mode<synchronous>, transform_indices = @transform_5, window_bounds = array<i64: 1536, 128>}, {pipeline_mode = #tpu.pipeline_mode<synchronous>, transform_indices = @transform_6, window_bounds = array<i64: 1, 1152>}, {transform_indices = @transform_7, window_bounds = array<i64: 16, 128>}, {transform_indices = @transform_8, window_bounds = array<i64: 16, 128>}]} {
    %c0 = arith.constant 0 : index
    %c0_0 = arith.constant 0 : index
    %0 = vector.load %arg7[%c0, %c0_0] : memref<1x1152xf32, #tpu.memory_space<vmem>>, vector<1x256xf32>
    %c0_1 = arith.constant 0 : index
    %c256 = arith.constant 256 : index
    %1 = vector.load %arg7[%c0_1, %c256] : memref<1x1152xf32, #tpu.memory_space<vmem>>, vector<1x768xf32>
    %c0_2 = arith.constant 0 : index
    %c1024 = arith.constant 1024 : index
    %2 = vector.load %arg7[%c0_2, %c1024] : memref<1x1152xf32, #tpu.memory_space<vmem>>, vector<1x128xf32>
    %c0_3 = arith.constant 0 : index
    %c0_4 = arith.constant 0 : index
    %3 = vector.load %arg1[%c0_3, %c0_4] : memref<16x128xf32, #tpu.memory_space<vmem>>, vector<16x128xf32>
    %4 = arith.truncf %3 : vector<16x128xf32> to vector<16x128xbf16>
    %c0_5 = arith.constant 0 : index
    %c0_6 = arith.constant 0 : index
    %5 = vector.load %arg4[%c0_5, %c0_6] : memref<128x256xbf16, #tpu.memory_space<vmem>>, vector<128x256xbf16>
    %cst = arith.constant dense<0.000000e+00> : vector<16x256xf32>
    %6 = tpu.matmul %4, %5, %cst {dimension_numbers = #tpu.dot_dimension_numbers<[1], [0], [0], [1], [0, 0, 1, 1], [], []>} : vector<16x128xbf16>, vector<128x256xbf16>, vector<16x256xf32> -> vector<16x256xf32>
    %7 = vector.broadcast %0 : vector<1x256xf32> to vector<16x256xf32>
    %8 = arith.addf %6, %7 : vector<16x256xf32>
    %cst_7 = arith.constant 0.000000e+00 : f32
    %9 = vector.broadcast %cst_7 : f32 to vector<16x256xf32>
    %10 = arith.maximumf %8, %9 : vector<16x256xf32>
    %11 = arith.truncf %10 : vector<16x256xf32> to vector<16x256xbf16>
    %c0_8 = arith.constant 0 : index
    %c0_9 = arith.constant 0 : index
    %12 = vector.load %arg5[%c0_8, %c0_9] : memref<256x768xbf16, #tpu.memory_space<vmem>>, vector<256x768xbf16>
    %cst_10 = arith.constant dense<0.000000e+00> : vector<16x768xf32>
    %13 = tpu.matmul %11, %12, %cst_10 {dimension_numbers = #tpu.dot_dimension_numbers<[1], [0], [0], [1], [0, 0, 1, 1], [], []>} : vector<16x256xbf16>, vector<256x768xbf16>, vector<16x768xf32> -> vector<16x768xf32>
    %14 = vector.broadcast %1 : vector<1x768xf32> to vector<16x768xf32>
    %15 = arith.addf %13, %14 : vector<16x768xf32>
    %cst_11 = arith.constant 0.000000e+00 : f32
    %16 = vector.broadcast %cst_11 : f32 to vector<16x768xf32>
    %17 = arith.maximumf %15, %16 : vector<16x768xf32>
    %18 = arith.truncf %17 : vector<16x768xf32> to vector<16x768xbf16>
    %c0_12 = arith.constant 0 : index
    %c0_13 = arith.constant 0 : index
    %19 = vector.load %arg2[%c0_12, %c0_13] : memref<16x768xbf16, #tpu.memory_space<vmem>>, vector<16x768xbf16>
    %20 = tpu.concatenate %18, %19 in 1 : vector<16x768xbf16>, vector<16x768xbf16> -> vector<16x1536xbf16>
    %c0_14 = arith.constant 0 : index
    %c0_15 = arith.constant 0 : index
    %21 = vector.load %arg6[%c0_14, %c0_15] : memref<1536x128xbf16, #tpu.memory_space<vmem>>, vector<1536x128xbf16>
    %cst_16 = arith.constant dense<0.000000e+00> : vector<16x128xf32>
    %22 = tpu.matmul %20, %21, %cst_16 {dimension_numbers = #tpu.dot_dimension_numbers<[1], [0], [0], [1], [0, 0, 1, 1], [], []>} : vector<16x1536xbf16>, vector<1536x128xbf16>, vector<16x128xf32> -> vector<16x128xf32>
    %23 = vector.broadcast %2 : vector<1x128xf32> to vector<16x128xf32>
    %24 = arith.addf %22, %23 : vector<16x128xf32>
    %c0_17 = arith.constant 0 : index
    %c0_18 = arith.constant 0 : index
    %25 = vector.load %arg8[%c0_17, %c0_18] : memref<16x128xf32, #tpu.memory_space<vmem>>, vector<16x128xf32>
    tpu.vector_store %arg8[%c0_17, %c0_18], %24 {strides = array<i32>} : memref<16x128xf32, #tpu.memory_space<vmem>>, vector<16x128xf32>,
    %26 = tpu.iota {dimensions = array<i32: 1>} : vector<16x128xi32>
    %c4_i32 = arith.constant 4 : i32
    %27 = vector.broadcast %c4_i32 : i32 to vector<16x128xi32>
    %28 = arith.cmpi slt, %26, %27 : vector<16x128xi32>
    %cst_19 = arith.constant -1.000000e+30 : f32
    %29 = vector.broadcast %cst_19 : f32 to vector<16x128xf32>
    %30 = arith.select %28, %24, %29 : vector<16x128xi1>, vector<16x128xf32>
    %cst_20 = arith.constant dense<0xFF800000> : vector<16xf32>
    %31 = vector.multi_reduction <maximumf>, %30, %cst_20 [1] : vector<16x128xf32> to vector<16xf32>
    %32 = vector.shape_cast %31 : vector<16xf32> to vector<16x1xf32>
    %33 = vector.broadcast %32 : vector<16x1xf32> to vector<16x128xf32>
    %34 = arith.subf %30, %33 : vector<16x128xf32>
    %35 = math.exp %34 : vector<16x128xf32>
    %cst_21 = arith.constant dense<0.000000e+00> : vector<16xf32>
    %36 = vector.multi_reduction <add>, %35, %cst_21 [1] : vector<16x128xf32> to vector<16xf32>
    %37 = vector.shape_cast %36 : vector<16xf32> to vector<16x1xf32>
    %38 = math.log %37 : vector<16x1xf32>
    %39 = arith.addf %32, %38 : vector<16x1xf32>
    %c0_22 = arith.constant 0 : index
    %c0_23 = arith.constant 0 : index
    %40 = vector.load %arg3[%c0_22, %c0_23] : memref<16x1xi32, #tpu.memory_space<vmem>>, vector<16x1xi32>
    %41 = vector.broadcast %40 : vector<16x1xi32> to vector<16x128xi32>
    %42 = arith.cmpi eq, %26, %41 : vector<16x128xi32>
    %cst_24 = arith.constant 0.000000e+00 : f32
    %43 = vector.broadcast %cst_24 : f32 to vector<16x128xf32>
    %44 = arith.select %42, %24, %43 : vector<16x128xi1>, vector<16x128xf32>
    %cst_25 = arith.constant dense<0.000000e+00> : vector<16xf32>
    %45 = vector.multi_reduction <add>, %44, %cst_25 [1] : vector<16x128xf32> to vector<16xf32>
    %46 = vector.shape_cast %45 : vector<16xf32> to vector<16x1xf32>
    %47 = arith.subf %39, %46 : vector<16x1xf32>
    %48 = tpu.iota {dimensions = array<i32: 0>} : vector<16x1xi32>
    %c16_i32 = arith.constant 16 : i32
    %49 = arith.muli %arg0, %c16_i32 : i32
    %50 = vector.broadcast %49 : i32 to vector<16x1xi32>
    %51 = arith.addi %48, %50 : vector<16x1xi32>
    %c8_i32 = arith.constant 8 : i32
    %52 = vector.broadcast %c8_i32 : i32 to vector<16x1xi32>
    %53 = arith.cmpi slt, %51, %52 : vector<16x1xi32>
    %cst_26 = arith.constant 0.000000e+00 : f32
    %54 = vector.broadcast %cst_26 : f32 to vector<16x1xf32>
    %55 = arith.select %53, %47, %54 : vector<16x1xi1>, vector<16x1xf32>
    %56 = vector.shape_cast %55 : vector<16x1xf32> to vector<16x1xf32>
    %57 = vector.broadcast %56 : vector<16x1xf32> to vector<16x128xf32>
    %c0_27 = arith.constant 0 : index
    %c0_28 = arith.constant 0 : index
    %58 = vector.load %arg9[%c0_27, %c0_28] : memref<16x128xf32, #tpu.memory_space<vmem>>, vector<16x128xf32>
    tpu.vector_store %arg9[%c0_27, %c0_28], %57 {strides = array<i32>} : memref<16x128xf32, #tpu.memory_space<vmem>>, vector<16x128xf32>,
    return
  }
  func.func @transform_0(%arg0: i32) -> (i32, i32) {
    %c0_i32 = arith.constant 0 : i32
    %c0_i32_0 = arith.constant 0 : i32
    return %arg0, %c0_i32 : i32, i32
  }
  func.func @transform_1(%arg0: i32) -> (i32, i32) {
    %c0_i32 = arith.constant 0 : i32
    %c0_i32_0 = arith.constant 0 : i32
    return %arg0, %c0_i32 : i32, i32
  }
  func.func @transform_2(%arg0: i32) -> (i32, i32) {
    %c0_i32 = arith.constant 0 : i32
    %c0_i32_0 = arith.constant 0 : i32
    return %arg0, %c0_i32 : i32, i32
  }
  func.func @transform_3(%arg0: i32) -> (i32, i32) {
    %c0_i32 = arith.constant 0 : i32
    %c0_i32_0 = arith.constant 0 : i32
    %c0_i32_1 = arith.constant 0 : i32
    return %c0_i32, %c0_i32_0 : i32, i32
  }
  func.func @transform_4(%arg0: i32) -> (i32, i32) {
    %c0_i32 = arith.constant 0 : i32
    %c0_i32_0 = arith.constant 0 : i32
    %c0_i32_1 = arith.constant 0 : i32
    return %c0_i32, %c0_i32_0 : i32, i32
  }
  func.func @transform_5(%arg0: i32) -> (i32, i32) {
    %c0_i32 = arith.constant 0 : i32
    %c0_i32_0 = arith.constant 0 : i32
    %c0_i32_1 = arith.constant 0 : i32
    return %c0_i32, %c0_i32_0 : i32, i32
  }
  func.func @transform_6(%arg0: i32) -> (i32, i32) {
    %c0_i32 = arith.constant 0 : i32
    %c0_i32_0 = arith.constant 0 : i32
    %c0_i32_1 = arith.constant 0 : i32
    return %c0_i32, %c0_i32_0 : i32, i32
  }
  func.func @transform_7(%arg0: i32) -> (i32, i32) {
    %c0_i32 = arith.constant 0 : i32
    %c0_i32_0 = arith.constant 0 : i32
    return %arg0, %c0_i32 : i32, i32
  }
  func.func @transform_8(%arg0: i32) -> (i32, i32) {
    %c0_i32 = arith.constant 0 : i32
    %c0_i32_0 = arith.constant 0 : i32
    return %arg0, %c0_i32 : i32, i32
  }
}

</mosaic_0001>

<llo_original>
// kernel: nn_forward.1
$region0: #{nn_forward.1}
  #allocation0 [shape = 'u32[]', space=smem, size = 0x4, offset = 0x4, fixed_abs, tag = 'smem constant byte address 0x4 - core index']
  #allocation1 [shape = 'u32[72,128]{1,0:T(1,128)}', space=vmem, size = 0x9000, scoped, tag = 'internal scratch']
  %s0 = inlined_call_operand.vmem [shape: f32[16,128], index: 0, kind: input, shape index: {}]
  %s1 = inlined_call_operand.vmem [shape: bf16[16,768], index: 1, kind: input, shape index: {}]
  %s2 = inlined_call_operand.vmem [shape: s32[16,1], index: 2, kind: input, shape index: {}]
  %s3 = inlined_call_operand.hbm [shape: bf16[128,256], index: 3, kind: input, shape index: {}]
  %s4 = inlined_call_operand.hbm [shape: bf16[256,768], index: 4, kind: input, shape index: {}]
  %s5 = inlined_call_operand.hbm [shape: bf16[1536,128], index: 5, kind: input, shape index: {}]
  %s6 = inlined_call_operand.vmem [shape: f32[1,1152], index: 6, kind: input, shape index: {}]
  %s7 = inlined_call_operand.vmem [shape: f32[16,128], index: 7, kind: output, shape index: {0}]
  %s8 = inlined_call_operand.vmem [shape: f32[16,128], index: 8, kind: output, shape index: {1}]
  %9 = xla_tuple %s7, %s8
  %s10 = sld [smem:[#allocation0]]
  $region58: #{nn_forward.1} parent=0
    _
  %s12 = ssub.s32 1, %s10
  %s13 = scalar_select 0, %s12, %s10
  $region1: #{nn_forward.1} parent=0
    #allocation2 [shape = 'u8[65536]{0}', space=vmem, size = 0x10000, scoped, tag = 'input window, operand 3, single buffered']
    #allocation3 [shape = 's32[1]{0}', space=sflag, size = 0x4, scoped, tag = 'scoped memory for nn_forward.1']
    #allocation4 [shape = 'u8[393216]{0}', space=vmem, size = 0x60000, scoped, tag = 'input window, operand 4, single buffered']
    #allocation5 [shape = 's32[1]{0}', space=sflag, size = 0x4, scoped, tag = 'scoped memory for nn_forward.1']
    #allocation6 [shape = 'u8[393216]{0}', space=vmem, size = 0x60000, scoped, tag = 'input window, operand 5, single buffered']
    %14 = vsyncpa [#allocation3], 0
    %15 = vsyncpa [#allocation5], 0
    // Predicated region
    $region2: #{nn_forward.1} parent=1 // pred_check
      _
    $region3: #{nn_forward.1} parent=1 // pred_check_branch
      %17 = sbr.rel (0) target = $region5
    $region4: #{nn_forward.1} parent=1 // pred_region
      _
    $region5: #{nn_forward.1} parent=1 // pred_fallthru
      _
    // Predicated region
    $region6: #{nn_forward.1} parent=1 // pred_check
      _
    $region7: #{nn_forward.1} parent=1 // pred_check_branch
      %19 = sbr.rel (0) target = $region9
    $region8: #{nn_forward.1} parent=1 // pred_region
      _
    $region9: #{nn_forward.1} parent=1 // pred_fallthru
      _
    // Predicated region
    $region10: #{nn_forward.1} parent=1 // pred_check
      _
    $region11: #{nn_forward.1} parent=1 // pred_check_branch
      %21 = sbr.rel (0) target = $region13
    $region12: #{nn_forward.1} parent=1 // pred_region
      _
    $region13: #{nn_forward.1} parent=1 // pred_fallthru
      _
    // Predicated region
    $region14: #{nn_forward.1} parent=1 // pred_check
      _
    $region15: #{nn_forward.1} parent=1 // pred_check_branch
      %23 = sbr.rel (0) target = $region17
    $region16: #{nn_forward.1} parent=1 // pred_region
      %25 = vsyncadd [#allocation3], 0
      %s26 = sshll.u32 %s3, 4
      %s27 = int_to_ptr.hbm [resolvable:$true] %s26
      %s28 = sshll.u32 [#allocation2], 4
      %s29 = int_to_ptr.vmem [resolvable:$true] %s28
      %34 = dma.hbm_to_vmem [thread:$0]  %s27, 2048, %s29, [#allocation3], 128, 128, 8
    $region17: #{nn_forward.1} parent=1 // pred_fallthru
      _
    // Predicated region
    $region18: #{nn_forward.1} parent=1 // pred_check
      _
    $region19: #{nn_forward.1} parent=1 // pred_check_branch
      %36 = sbr.rel (0) target = $region21
    $region20: #{nn_forward.1} parent=1 // pred_region
      %38 = vsyncadd [#allocation5], 0
      %s39 = sshll.u32 %s4, 4
      %s40 = int_to_ptr.hbm [resolvable:$true] %s39
      %s41 = sshll.u32 [#allocation4], 4
      %s42 = int_to_ptr.vmem [resolvable:$true] %s41
      %47 = dma.hbm_to_vmem [thread:$0]  %s40, 12288, %s42, [#allocation5], 384, 384, 24
    $region21: #{nn_forward.1} parent=1 // pred_fallthru
      _
    // Predicated region
    $region22: #{nn_forward.1} parent=1 // pred_check
      _
    $region23: #{nn_forward.1} parent=1 // pred_check_branch
      %49 = sbr.rel (0) target = $region25
    $region24: #{nn_forward.1} parent=1 // pred_region
      %51 = vsyncadd [#allocation5], 0
      %s52 = sshll.u32 %s5, 4
      %s53 = int_to_ptr.hbm [resolvable:$true] %s52
      %s54 = sshll.u32 [#allocation6], 4
      %s55 = int_to_ptr.vmem [resolvable:$true] %s54
      %60 = dma.hbm_to_vmem [thread:$0]  %s53, 12288, %s55, [#allocation5], 64, 64, 4
    $region25: #{nn_forward.1} parent=1 // pred_fallthru
      _
    // Predicated region
    $region26: #{nn_forward.1} parent=1 // pred_check
      _
    $region27: #{nn_forward.1} parent=1 // pred_check_branch
      %62 = sbr.rel (0) target = $region29
    $region28: #{nn_forward.1} parent=1 // pred_region
      _
    $region29: #{nn_forward.1} parent=1 // pred_fallthru
      _
    // Predicated region
    $region30: #{nn_forward.1} parent=1 // pred_check
      _
    $region31: #{nn_forward.1} parent=1 // pred_check_branch
      %64 = sbr.rel (0) target = $region33
    $region32: #{nn_forward.1} parent=1 // pred_region
      %66 = dma.done [#allocation3], 2048
    $region33: #{nn_forward.1} parent=1 // pred_fallthru
      _
    // Predicated region
    $region34: #{nn_forward.1} parent=1 // pred_check
      _
    $region35: #{nn_forward.1} parent=1 // pred_check_branch
      %68 = sbr.rel (0) target = $region37
    $region36: #{nn_forward.1} parent=1 // pred_region
      %70 = dma.done [#allocation5], 12288
    $region37: #{nn_forward.1} parent=1 // pred_fallthru
      _
    // Predicated region
    $region38: #{nn_forward.1} parent=1 // pred_check
      _
    $region39: #{nn_forward.1} parent=1 // pred_check_branch
      %72 = sbr.rel (0) target = $region41
    $region40: #{nn_forward.1} parent=1 // pred_region
      %74 = dma.done [#allocation5], 12288
    $region41: #{nn_forward.1} parent=1 // pred_fallthru
      _
    %v75 = vld [vmem:[%s6] sm:$0x3]
    %v76 = vld [vmem:[%s6 + $0x2] sm:$0x3f]
    %v77 = vld [vmem:[%s6 + $0x8] sm:$0x1]
    %v78 = vld [vmem:[%s0] sm:$0xff]
    %v79 = vld [vmem:[%s0 + $0x8] sm:$0xff]
    %v80 = vpack.c.bf16 %v79, %v78
    %v81 = vld [vmem:[#allocation2] sm:$0xff]
    %v82 = vld [vmem:[#allocation2 + $0x8] sm:$0xff]
    %v83 = vld [vmem:[#allocation2 + $0x10] sm:$0xff]
    %v84 = vld [vmem:[#allocation2 + $0x18] sm:$0xff]
    %v85 = vld [vmem:[#allocation2 + $0x20] sm:$0xff]
    %v86 = vld [vmem:[#allocation2 + $0x28] sm:$0xff]
    %v87 = vld [vmem:[#allocation2 + $0x30] sm:$0xff]
    %v88 = vld [vmem:[#allocation2 + $0x38] sm:$0xff]
    %v89 = vld [vmem:[#allocation2 + $0x40] sm:$0xff]
    %v90 = vld [vmem:[#allocation2 + $0x48] sm:$0xff]
    %v91 = vld [vmem:[#allocation2 + $0x50] sm:$0xff]
    %v92 = vld [vmem:[#allocation2 + $0x58] sm:$0xff]
    %v93 = vld [vmem:[#allocation2 + $0x60] sm:$0xff]
    %v94 = vld [vmem:[#allocation2 + $0x68] sm:$0xff]
    %v95 = vld [vmem:[#allocation2 + $0x70] sm:$0xff]
    %v96 = vld [vmem:[#allocation2 + $0x78] sm:$0xff]
    %v98 = vperm.slane %v75, 0
    %v99 = vperm.slane %v75, 1
    %v118 = vunpack.c.l.b16 %v81
    %v119 = vunpack.c.h.b16 %v81
    %v120 = vunpack.c.l.b16 %v82
    %v121 = vunpack.c.h.b16 %v82
    %v122 = vunpack.c.l.b16 %v83
    %v123 = vunpack.c.h.b16 %v83
    %v124 = vunpack.c.l.b16 %v84
    %v125 = vunpack.c.h.b16 %v84
    %v126 = vunpack.c.l.b16 %v85
    %v127 = vunpack.c.h.b16 %v85
    %v128 = vunpack.c.l.b16 %v86
    %v129 = vunpack.c.h.b16 %v86
    %v130 = vunpack.c.l.b16 %v87
    %v131 = vunpack.c.h.b16 %v87
    %v132 = vunpack.c.l.b16 %v88
    %v133 = vunpack.c.h.b16 %v88
    %v134 = vunpack.c.l.b16 %v89
    %v135 = vunpack.c.h.b16 %v89
    %v136 = vunpack.c.l.b16 %v90
    %v137 = vunpack.c.h.b16 %v90
    %v138 = vunpack.c.l.b16 %v91
    %v139 = vunpack.c.h.b16 %v91
    %v140 = vunpack.c.l.b16 %v92
    %v141 = vunpack.c.h.b16 %v92
    %v142 = vunpack.c.l.b16 %v93
    %v143 = vunpack.c.h.b16 %v93
    %v144 = vunpack.c.l.b16 %v94
    %v145 = vunpack.c.h.b16 %v94
    %v146 = vunpack.c.l.b16 %v95
    %v147 = vunpack.c.h.b16 %v95
    %v148 = vunpack.c.l.b16 %v96
    %v149 = vunpack.c.h.b16 %v96
    %v150 = vpack.c.b16 %v120, %v118
    %v151 = vpack.c.b16 %v121, %v119
    %v152 = vpack.c.b16 %v124, %v122
    %v153 = vpack.c.b16 %v125, %v123
    %v154 = vpack.c.b16 %v128, %v126
    %v155 = vpack.c.b16 %v129, %v127
    %v156 = vpack.c.b16 %v132, %v130
    %v157 = vpack.c.b16 %v133, %v131
    %v158 = vpack.c.b16 %v136, %v134
    %v159 = vpack.c.b16 %v137, %v135
    %v160 = vpack.c.b16 %v140, %v138
    %v161 = vpack.c.b16 %v141, %v139
    %v162 = vpack.c.b16 %v144, %v142
    %v163 = vpack.c.b16 %v145, %v143
    %v164 = vpack.c.b16 %v148, %v146
    %v165 = vpack.c.b16 %v149, %v147
    %182 = vmatpush.bf16.msra.mxu0 %v164
    %183 = vmatpush.bf16.msra.mxu0 %v162
    %184 = vmatpush.bf16.msra.mxu0 %v160
    %185 = vmatpush.bf16.msra.mxu0 %v158
    %186 = vmatpush.bf16.msra.mxu0 %v156
    %187 = vmatpush.bf16.msra.mxu0 %v154
    %188 = vmatpush.bf16.msra.mxu0 %v152
    %189 = vmatpush.bf16.msra.mxu0 %v150
    %190 = vmatmul.bf16.gmra.mxu0 %v80
    %v191 = vpop.f32.mrf.mxu0
    %v192 = vadd.f32 %v98, %v191
    %v193 = vpop.f32.mrf.mxu0
    %v194 = vadd.f32 %v98, %v193
    %195 = vdwg.mxu0
    %196 = vmatpush.bf16.msra.mxu0 %v165
    %197 = vmatpush.bf16.msra.mxu0 %v163
    %198 = vmatpush.bf16.msra.mxu0 %v161
    %199 = vmatpush.bf16.msra.mxu0 %v159
    %200 = vmatpush.bf16.msra.mxu0 %v157
    %201 = vmatpush.bf16.msra.mxu0 %v155
    %202 = vmatpush.bf16.msra.mxu0 %v153
    %203 = vmatpush.bf16.msra.mxu0 %v151
    %204 = vmatmul.bf16.gmra.mxu0 %v80
    %v205 = vpop.f32.mrf.mxu0
    %v206 = vadd.f32 %v99, %v205
    %v207 = vpop.f32.mrf.mxu0
    %v208 = vadd.f32 %v99, %v207
    %209 = vdwg.mxu0
    %v210 = vmax.f32 %v192, 0.0
    %v211 = vmax.f32 %v206, 0.0
    %v212 = vmax.f32 %v194, 0.0
    %v213 = vmax.f32 %v208, 0.0
    %v214 = vpack.c.bf16 %v212, %v210
    %v215 = vpack.c.bf16 %v213, %v211
    %v216 = vld [vmem:[#allocation4] sm:$0xff]
    %v217 = vld [vmem:[#allocation4 + $0x8] sm:$0xff]
    %v218 = vld [vmem:[#allocation4 + $0x10] sm:$0xff]
    %v219 = vld [vmem:[#allocation4 + $0x18] sm:$0xff]
    %v220 = vld [vmem:[#allocation4 + $0x20] sm:$0xff]
    %v221 = vld [vmem:[#allocation4 + $0x28] sm:$0xff]
    %v222 = vld [vmem:[#allocation4 + $0x30] sm:$0xff]
    %v223 = vld [vmem:[#allocation4 + $0x38] sm:$0xff]
    %v224 = vld [vmem:[#allocation4 + $0x40] sm:$0xff]
    %v225 = vld [vmem:[#allocation4 + $0x48] sm:$0xff]
    %v226 = vld [vmem:[#allocation4 + $0x50] sm:$0xff]
    %v227 = vld [vmem:[#allocation4 + $0x58] sm:$0xff]
    %v228 = vld [vmem:[#allocation4 + $0x60] sm:$0xff]
    %v229 = vld [vmem:[#allocation4 + $0x68] sm:$0xff]
    %v230 = vld [vmem:[#allocation4 + $0x70] sm:$0xff]
    %v231 = vld [vmem:[#allocation4 + $0x78] sm:$0xff]
    %v232 = vld [vmem:[#allocation4 + $0x80] sm:$0xff]
    %v233 = vld [vmem:[#allocation4 + $0x88] sm:$0xff]
    %v234 = vld [vmem:[#allocation4 + $0x90] sm:$0xff]
    %v235 = vld [vmem:[#allocation4 + $0x98] sm:$0xff]
    %v236 = vld [vmem:[#allocation4 + $0xa0] sm:$0xff]
    %v237 = vld [vmem:[#allocation4 + $0xa8] sm:$0xff]
    %v238 = vld [vmem:[#allocation4 + $0xb0] sm:$0xff]
    %v239 = vld [vmem:[#allocation4 + $0xb8] sm:$0xff]
    %v240 = vld [vmem:[#allocation4 + $0xc0] sm:$0xff]
    %v241 = vld [vmem:[#allocation4 + $0xc8] sm:$0xff]
    %v242 = vld [vmem:[#allocation4 + $0xd0] sm:$0xff]
    %v243 = vld [vmem:[#allocation4 + $0xd8] sm:$0xff]
    %v244 = vld [vmem:[#allocation4 + $0xe0] sm:$0xff]
    %v245 = vld [vmem:[#allocation4 + $0xe8] sm:$0xff]
    %v246 = vld [vmem:[#allocation4 + $0xf0] sm:$0xff]
    %v247 = vld [vmem:[#allocation4 + $0xf8] sm:$0xff]
    %v248 = vld [vmem:[#allocation4 + $0x100] sm:$0xff]
    %v249 = vld [vmem:[#allocation4 + $0x108] sm:$0xff]
    %v250 = vld [vmem:[#allocation4 + $0x110] sm:$0xff]
    %v251 = vld [vmem:[#allocation4 + $0x118] sm:$0xff]
    %v252 = vld [vmem:[#allocation4 + $0x120] sm:$0xff]
    %v253 = vld [vmem:[#allocation4 + $0x128] sm:$0xff]
    %v254 = vld [vmem:[#allocation4 + $0x130] sm:$0xff]
    %v255 = vld [vmem:[#allocation4 + $0x138] sm:$0xff]
    %v256 = vld [vmem:[#allocation4 + $0x140] sm:$0xff]
    %v257 = vld [vmem:[#allocation4 + $0x148] sm:$0xff]
    %v258 = vld [vmem:[#allocation4 + $0x150] sm:$0xff]
    %v259 = vld [vmem:[#allocation4 + $0x158] sm:$0xff]
    %v260 = vld [vmem:[#allocation4 + $0x160] sm:$0xff]
    %v261 = vld [vmem:[#allocation4 + $0x168] sm:$0xff]
    %v262 = vld [vmem:[#allocation4 + $0x170] sm:$0xff]
    %v263 = vld [vmem:[#allocation4 + $0x178] sm:$0xff]
    %v264 = vld [vmem:[#allocation4 + $0x180] sm:$0xff]
    %v265 = vld [vmem:[#allocation4 + $0x188] sm:$0xff]
    %v266 = vld [vmem:[#allocation4 + $0x190] sm:$0xff]
    %v267 = vld [vmem:[#allocation4 + $0x198] sm:$0xff]
    %v268 = vld [vmem:[#allocation4 + $0x1a0] sm:$0xff]
    %v269 = vld [vmem:[#allocation4 + $0x1a8] sm:$0xff]
    %v270 = vld [vmem:[#allocation4 + $0x1b0] sm:$0xff]
    %v271 = vld [vmem:[#allocation4 + $0x1b8] sm:$0xff]
    %v272 = vld [vmem:[#allocation4 + $0x1c0] sm:$0xff]
    %v273 = vld [vmem:[#allocation4 + $0x1c8] sm:$0xff]
    %v274 = vld [vmem:[#allocation4 + $0x1d0] sm:$0xff]
    %v275 = vld [vmem:[#allocation4 + $0x1d8] sm:$0xff]
    %v276 = vld [vmem:[#allocation4 + $0x1e0] sm:$0xff]
    %v277 = vld [vmem:[#allocation4 + $0x1e8] sm:$0xff]
    %v278 = vld [vmem:[#allocation4 + $0x1f0] sm:$0xff]
    %v279 = vld [vmem:[#allocation4 + $0x1f8] sm:$0xff]
    %v280 = vld [vmem:[#allocation4 + $0x200] sm:$0xff]
    %v281 = vld [vmem:[#allocation4 + $0x208] sm:$0xff]
    %v282 = vld [vmem:[#allocation4 + $0x210] sm:$0xff]
    %v283 = vld [vmem:[#allocation4 + $0x218] sm:$0xff]
    %v284 = vld [vmem:[#allocation4 + $0x220] sm:$0xff]
    %v285 = vld [vmem:[#allocation4 + $0x228] sm:$0xff]
    %v286 = vld [vmem:[#allocation4 + $0x230] sm:$0xff]
    %v287 = vld [vmem:[#allocation4 + $0x238] sm:$0xff]
    %v288 = vld [vmem:[#allocation4 + $0x240] sm:$0xff]
    %v289 = vld [vmem:[#allocation4 + $0x248] sm:$0xff]
    %v290 = vld [vmem:[#allocation4 + $0x250] sm:$0xff]
    %v291 = vld [vmem:[#allocation4 + $0x258] sm:$0xff]
    %v292 = vld [vmem:[#allocation4 + $0x260] sm:$0xff]
    %v293 = vld [vmem:[#allocation4 + $0x268] sm:$0xff]
    %v294 = vld [vmem:[#allocation4 + $0x270] sm:$0xff]
    %v295 = vld [vmem:[#allocation4 + $0x278] sm:$0xff]
    %v296 = vld [vmem:[#allocation4 + $0x280] sm:$0xff]
    %v297 = vld [vmem:[#allocation4 + $0x288] sm:$0xff]
    %v298 = vld [vmem:[#allocation4 + $0x290] sm:$0xff]
    %v299 = vld [vmem:[#allocation4 + $0x298] sm:$0xff]
    %v300 = vld [vmem:[#allocation4 + $0x2a0] sm:$0xff]
    %v301 = vld [vmem:[#allocation4 + $0x2a8] sm:$0xff]
    %v302 = vld [vmem:[#allocation4 + $0x2b0] sm:$0xff]
    %v303 = vld [vmem:[#allocation4 + $0x2b8] sm:$0xff]
    %v304 = vld [vmem:[#allocation4 + $0x2c0] sm:$0xff]
    %v305 = vld [vmem:[#allocation4 + $0x2c8] sm:$0xff]
    %v306 = vld [vmem:[#allocation4 + $0x2d0] sm:$0xff]
    %v307 = vld [vmem:[#allocation4 + $0x2d8] sm:$0xff]
    %v308 = vld [vmem:[#allocation4 + $0x2e0] sm:$0xff]
    %v309 = vld [vmem:[#allocation4 + $0x2e8] sm:$0xff]
    %v310 = vld [vmem:[#allocation4 + $0x2f0] sm:$0xff]
    %v311 = vld [vmem:[#allocation4 + $0x2f8] sm:$0xff]
    %v313 = vperm.slane %v76, 0
    %v314 = vperm.slane %v76, 1
    %v315 = vperm.slane %v76, 2
    %v316 = vperm.slane %v76, 3
    %v317 = vperm.slane %v76, 4
    %v318 = vperm.slane %v76, 5
    %v421 = vunpack.c.l.b16 %v216
    %v422 = vunpack.c.h.b16 %v216
    %v423 = vunpack.c.l.b16 %v217
    %v424 = vunpack.c.h.b16 %v217
    %v425 = vunpack.c.l.b16 %v218
    %v426 = vunpack.c.h.b16 %v218
    %v427 = vunpack.c.l.b16 %v219
    %v428 = vunpack.c.h.b16 %v219
    %v429 = vunpack.c.l.b16 %v220
    %v430 = vunpack.c.h.b16 %v220
    %v431 = vunpack.c.l.b16 %v221
    %v432 = vunpack.c.h.b16 %v221
    %v433 = vunpack.c.l.b16 %v222
    %v434 = vunpack.c.h.b16 %v222
    %v435 = vunpack.c.l.b16 %v223
    %v436 = vunpack.c.h.b16 %v223
    %v437 = vunpack.c.l.b16 %v224
    %v438 = vunpack.c.h.b16 %v224
    %v439 = vunpack.c.l.b16 %v225
    %v440 = vunpack.c.h.b16 %v225
    %v441 = vunpack.c.l.b16 %v226
    %v442 = vunpack.c.h.b16 %v226
    %v443 = vunpack.c.l.b16 %v227
    %v444 = vunpack.c.h.b16 %v227
    %v445 = vunpack.c.l.b16 %v228
    %v446 = vunpack.c.h.b16 %v228
    %v447 = vunpack.c.l.b16 %v229
    %v448 = vunpack.c.h.b16 %v229
    %v449 = vunpack.c.l.b16 %v230
    %v450 = vunpack.c.h.b16 %v230
    %v451 = vunpack.c.l.b16 %v231
    %v452 = vunpack.c.h.b16 %v231
    %v453 = vunpack.c.l.b16 %v232
    %v454 = vunpack.c.h.b16 %v232
    %v455 = vunpack.c.l.b16 %v233
    %v456 = vunpack.c.h.b16 %v233
    %v457 = vunpack.c.l.b16 %v234
    %v458 = vunpack.c.h.b16 %v234
    %v459 = vunpack.c.l.b16 %v235
    %v460 = vunpack.c.h.b16 %v235
    %v461 = vunpack.c.l.b16 %v236
    %v462 = vunpack.c.h.b16 %v236
    %v463 = vunpack.c.l.b16 %v237
    %v464 = vunpack.c.h.b16 %v237
    %v465 = vunpack.c.l.b16 %v238
    %v466 = vunpack.c.h.b16 %v238
    %v467 = vunpack.c.l.b16 %v239
    %v468 = vunpack.c.h.b16 %v239
    %v469 = vunpack.c.l.b16 %v240
    %v470 = vunpack.c.h.b16 %v240
    %v471 = vunpack.c.l.b16 %v241
    %v472 = vunpack.c.h.b16 %v241
    %v473 = vunpack.c.l.b16 %v242
    %v474 = vunpack.c.h.b16 %v242
    %v475 = vunpack.c.l.b16 %v243
    %v476 = vunpack.c.h.b16 %v243
    %v477 = vunpack.c.l.b16 %v244
    %v478 = vunpack.c.h.b16 %v244
    %v479 = vunpack.c.l.b16 %v245
    %v480 = vunpack.c.h.b16 %v245
    %v481 = vunpack.c.l.b16 %v246
    %v482 = vunpack.c.h.b16 %v246
    %v483 = vunpack.c.l.b16 %v247
    %v484 = vunpack.c.h.b16 %v247
    %v485 = vunpack.c.l.b16 %v248
    %v486 = vunpack.c.h.b16 %v248
    %v487 = vunpack.c.l.b16 %v249
    %v488 = vunpack.c.h.b16 %v249
    %v489 = vunpack.c.l.b16 %v250
    %v490 = vunpack.c.h.b16 %v250
    %v491 = vunpack.c.l.b16 %v251
    %v492 = vunpack.c.h.b16 %v251
    %v493 = vunpack.c.l.b16 %v252
    %v494 = vunpack.c.h.b16 %v252
    %v495 = vunpack.c.l.b16 %v253
    %v496 = vunpack.c.h.b16 %v253
    %v497 = vunpack.c.l.b16 %v254
    %v498 = vunpack.c.h.b16 %v254
    %v499 = vunpack.c.l.b16 %v255
    %v500 = vunpack.c.h.b16 %v255
    %v501 = vunpack.c.l.b16 %v256
    %v502 = vunpack.c.h.b16 %v256
    %v503 = vunpack.c.l.b16 %v257
    %v504 = vunpack.c.h.b16 %v257
    %v505 = vunpack.c.l.b16 %v258
    %v506 = vunpack.c.h.b16 %v258
    %v507 = vunpack.c.l.b16 %v259
    %v508 = vunpack.c.h.b16 %v259
    %v509 = vunpack.c.l.b16 %v260
    %v510 = vunpack.c.h.b16 %v260
    %v511 = vunpack.c.l.b16 %v261
    %v512 = vunpack.c.h.b16 %v261
    %v513 = vunpack.c.l.b16 %v262
    %v514 = vunpack.c.h.b16 %v262
    %v515 = vunpack.c.l.b16 %v263
    %v516 = vunpack.c.h.b16 %v263
    %v517 = vunpack.c.l.b16 %v264
    %v518 = vunpack.c.h.b16 %v264
    %v519 = vunpack.c.l.b16 %v265
    %v520 = vunpack.c.h.b16 %v265
    %v521 = vunpack.c.l.b16 %v266
    %v522 = vunpack.c.h.b16 %v266
    %v523 = vunpack.c.l.b16 %v267
    %v524 = vunpack.c.h.b16 %v267
    %v525 = vunpack.c.l.b16 %v268
    %v526 = vunpack.c.h.b16 %v268
    %v527 = vunpack.c.l.b16 %v269
    %v528 = vunpack.c.h.b16 %v269
    %v529 = vunpack.c.l.b16 %v270
    %v530 = vunpack.c.h.b16 %v270
    %v531 = vunpack.c.l.b16 %v271
    %v532 = vunpack.c.h.b16 %v271
    %v533 = vunpack.c.l.b16 %v272
    %v534 = vunpack.c.h.b16 %v272
    %v535 = vunpack.c.l.b16 %v273
    %v536 = vunpack.c.h.b16 %v273
    %v537 = vunpack.c.l.b16 %v274
    %v538 = vunpack.c.h.b16 %v274
    %v539 = vunpack.c.l.b16 %v275
    %v540 = vunpack.c.h.b16 %v275
    %v541 = vunpack.c.l.b16 %v276
    %v542 = vunpack.c.h.b16 %v276
    %v543 = vunpack.c.l.b16 %v277
    %v544 = vunpack.c.h.b16 %v277
    %v545 = vunpack.c.l.b16 %v278
    %v546 = vunpack.c.h.b16 %v278
    %v547 = vunpack.c.l.b16 %v279
    %v548 = vunpack.c.h.b16 %v279
    %v549 = vunpack.c.l.b16 %v280
    %v550 = vunpack.c.h.b16 %v280
    %v551 = vunpack.c.l.b16 %v281
    %v552 = vunpack.c.h.b16 %v281
    %v553 = vunpack.c.l.b16 %v282
    %v554 = vunpack.c.h.b16 %v282
    %v555 = vunpack.c.l.b16 %v283
    %v556 = vunpack.c.h.b16 %v283
    %v557 = vunpack.c.l.b16 %v284
    %v558 = vunpack.c.h.b16 %v284
    %v559 = vunpack.c.l.b16 %v285
    %v560 = vunpack.c.h.b16 %v285
    %v561 = vunpack.c.l.b16 %v286
    %v562 = vunpack.c.h.b16 %v286
    %v563 = vunpack.c.l.b16 %v287
    %v564 = vunpack.c.h.b16 %v287
    %v565 = vunpack.c.l.b16 %v288
    %v566 = vunpack.c.h.b16 %v288
    %v567 = vunpack.c.l.b16 %v289
    %v568 = vunpack.c.h.b16 %v289
    %v569 = vunpack.c.l.b16 %v290
    %v570 = vunpack.c.h.b16 %v290
    %v571 = vunpack.c.l.b16 %v291
    %v572 = vunpack.c.h.b16 %v291
    %v573 = vunpack.c.l.b16 %v292
    %v574 = vunpack.c.h.b16 %v292
    %v575 = vunpack.c.l.b16 %v293
    %v576 = vunpack.c.h.b16 %v293
    %v577 = vunpack.c.l.b16 %v294
    %v578 = vunpack.c.h.b16 %v294
    %v579 = vunpack.c.l.b16 %v295
    %v580 = vunpack.c.h.b16 %v295
    %v581 = vunpack.c.l.b16 %v296
    %v582 = vunpack.c.h.b16 %v296
    %v583 = vunpack.c.l.b16 %v297
    %v584 = vunpack.c.h.b16 %v297
    %v585 = vunpack.c.l.b16 %v298
    %v586 = vunpack.c.h.b16 %v298
    %v587 = vunpack.c.l.b16 %v299
    %v588 = vunpack.c.h.b16 %v299
    %v589 = vunpack.c.l.b16 %v300
    %v590 = vunpack.c.h.b16 %v300
    %v591 = vunpack.c.l.b16 %v301
    %v592 = vunpack.c.h.b16 %v301
    %v593 = vunpack.c.l.b16 %v302
    %v594 = vunpack.c.h.b16 %v302
    %v595 = vunpack.c.l.b16 %v303
    %v596 = vunpack.c.h.b16 %v303
    %v597 = vunpack.c.l.b16 %v304
    %v598 = vunpack.c.h.b16 %v304
    %v599 = vunpack.c.l.b16 %v305
    %v600 = vunpack.c.h.b16 %v305
    %v601 = vunpack.c.l.b16 %v306
    %v602 = vunpack.c.h.b16 %v306
    %v603 = vunpack.c.l.b16 %v307
    %v604 = vunpack.c.h.b16 %v307
    %v605 = vunpack.c.l.b16 %v308
    %v606 = vunpack.c.h.b16 %v308
    %v607 = vunpack.c.l.b16 %v309
    %v608 = vunpack.c.h.b16 %v309
    %v609 = vunpack.c.l.b16 %v310
    %v610 = vunpack.c.h.b16 %v310
    %v611 = vunpack.c.l.b16 %v311
    %v612 = vunpack.c.h.b16 %v311
    %v613 = vpack.c.b16 %v427, %v421
    %v614 = vpack.c.b16 %v428, %v422
    %v615 = vpack.c.b16 %v429, %v423
    %v616 = vpack.c.b16 %v430, %v424
    %v617 = vpack.c.b16 %v431, %v425
    %v618 = vpack.c.b16 %v432, %v426
    %v619 = vpack.c.b16 %v439, %v433
    %v620 = vpack.c.b16 %v440, %v434
    %v621 = vpack.c.b16 %v441, %v435
    %v622 = vpack.c.b16 %v442, %v436
    %v623 = vpack.c.b16 %v443, %v437
    %v624 = vpack.c.b16 %v444, %v438
    %v625 = vpack.c.b16 %v451, %v445
    %v626 = vpack.c.b16 %v452, %v446
    %v627 = vpack.c.b16 %v453, %v447
    %v628 = vpack.c.b16 %v454, %v448
    %v629 = vpack.c.b16 %v455, %v449
    %v630 = vpack.c.b16 %v456, %v450
    %v631 = vpack.c.b16 %v463, %v457
    %v632 = vpack.c.b16 %v464, %v458
    %v633 = vpack.c.b16 %v465, %v459
    %v634 = vpack.c.b16 %v466, %v460
    %v635 = vpack.c.b16 %v467, %v461
    %v636 = vpack.c.b16 %v468, %v462
    %v637 = vpack.c.b16 %v475, %v469
    %v638 = vpack.c.b16 %v476, %v470
    %v639 = vpack.c.b16 %v477, %v471
    %v640 = vpack.c.b16 %v478, %v472
    %v641 = vpack.c.b16 %v479, %v473
    %v642 = vpack.c.b16 %v480, %v474
    %v643 = vpack.c.b16 %v487, %v481
    %v644 = vpack.c.b16 %v488, %v482
    %v645 = vpack.c.b16 %v489, %v483
    %v646 = vpack.c.b16 %v490, %v484
    %v647 = vpack.c.b16 %v491, %v485
    %v648 = vpack.c.b16 %v492, %v486
    %v649 = vpack.c.b16 %v499, %v493
    %v650 = vpack.c.b16 %v500, %v494
    %v651 = vpack.c.b16 %v501, %v495
    %v652 = vpack.c.b16 %v502, %v496
    %v653 = vpack.c.b16 %v503, %v497
    %v654 = vpack.c.b16 %v504, %v498
    %v655 = vpack.c.b16 %v511, %v505
    %v656 = vpack.c.b16 %v512, %v506
    %v657 = vpack.c.b16 %v513, %v507
    %v658 = vpack.c.b16 %v514, %v508
    %v659 = vpack.c.b16 %v515, %v509
    %v660 = vpack.c.b16 %v516, %v510
    %v661 = vpack.c.b16 %v523, %v517
    %v662 = vpack.c.b16 %v524, %v518
    %v663 = vpack.c.b16 %v525, %v519
    %v664 = vpack.c.b16 %v526, %v520
    %v665 = vpack.c.b16 %v527, %v521
    %v666 = vpack.c.b16 %v528, %v522
    %v667 = vpack.c.b16 %v535, %v529
    %v668 = vpack.c.b16 %v536, %v530
    %v669 = vpack.c.b16 %v537, %v531
    %v670 = vpack.c.b16 %v538, %v532
    %v671 = vpack.c.b16 %v539, %v533
    %v672 = vpack.c.b16 %v540, %v534
    %v673 = vpack.c.b16 %v547, %v541
    %v674 = vpack.c.b16 %v548, %v542
    %v675 = vpack.c.b16 %v549, %v543
    %v676 = vpack.c.b16 %v550, %v544
    %v677 = vpack.c.b16 %v551, %v545
    %v678 = vpack.c.b16 %v552, %v546
    %v679 = vpack.c.b16 %v559, %v553
    %v680 = vpack.c.b16 %v560, %v554
    %v681 = vpack.c.b16 %v561, %v555
    %v682 = vpack.c.b16 %v562, %v556
    %v683 = vpack.c.b16 %v563, %v557
    %v684 = vpack.c.b16 %v564, %v558
    %v685 = vpack.c.b16 %v571, %v565
    %v686 = vpack.c.b16 %v572, %v566
    %v687 = vpack.c.b16 %v573, %v567
    %v688 = vpack.c.b16 %v574, %v568
    %v689 = vpack.c.b16 %v575, %v569
    %v690 = vpack.c.b16 %v576, %v570
    %v691 = vpack.c.b16 %v583, %v577
    %v692 = vpack.c.b16 %v584, %v578
    %v693 = vpack.c.b16 %v585, %v579
    %v694 = vpack.c.b16 %v586, %v580
    %v695 = vpack.c.b16 %v587, %v581
    %v696 = vpack.c.b16 %v588, %v582
    %v697 = vpack.c.b16 %v595, %v589
    %v698 = vpack.c.b16 %v596, %v590
    %v699 = vpack.c.b16 %v597, %v591
    %v700 = vpack.c.b16 %v598, %v592
    %v701 = vpack.c.b16 %v599, %v593
    %v702 = vpack.c.b16 %v600, %v594
    %v703 = vpack.c.b16 %v607, %v601
    %v704 = vpack.c.b16 %v608, %v602
    %v705 = vpack.c.b16 %v609, %v603
    %v706 = vpack.c.b16 %v610, %v604
    %v707 = vpack.c.b16 %v611, %v605
    %v708 = vpack.c.b16 %v612, %v606
    %805 = vmatpush.bf16.msra.mxu0 %v655
    %806 = vmatpush.bf16.msra.mxu0 %v649
    %807 = vmatpush.bf16.msra.mxu0 %v643
    %808 = vmatpush.bf16.msra.mxu0 %v637
    %809 = vmatpush.bf16.msra.mxu0 %v631
    %810 = vmatpush.bf16.msra.mxu0 %v625
    %811 = vmatpush.bf16.msra.mxu0 %v619
    %812 = vmatpush.bf16.msra.mxu0 %v613
    %813 = vmatmul.bf16.gmra.mxu0 %v214
    %v814 = vpop.f32.mrf.mxu0
    %v815 = vadd.f32 %v313, %v814
    %v816 = vpop.f32.mrf.mxu0
    %v817 = vadd.f32 %v313, %v816
    %818 = vdwg.mxu0
    %819 = vmatpush.bf16.msra.mxu0 %v703
    %820 = vmatpush.bf16.msra.mxu0 %v697
    %821 = vmatpush.bf16.msra.mxu0 %v691
    %822 = vmatpush.bf16.msra.mxu0 %v685
    %823 = vmatpush.bf16.msra.mxu0 %v679
    %824 = vmatpush.bf16.msra.mxu0 %v673
    %825 = vmatpush.bf16.msra.mxu0 %v667
    %826 = vmatpush.bf16.msra.mxu0 %v661
    %827 = vmatmul.bf16.gmra.mxu0 %v215
    %v828 = vpop.f32.mrf.mxu0
    %v829 = vadd.f32 %v815, %v828
    %v830 = vpop.f32.mrf.mxu0
    %v831 = vadd.f32 %v817, %v830
    %832 = vdwg.mxu0
    %833 = vmatpush.bf16.msra.mxu0 %v656
    %834 = vmatpush.bf16.msra.mxu0 %v650
    %835 = vmatpush.bf16.msra.mxu0 %v644
    %836 = vmatpush.bf16.msra.mxu0 %v638
    %837 = vmatpush.bf16.msra.mxu0 %v632
    %838 = vmatpush.bf16.msra.mxu0 %v626
    %839 = vmatpush.bf16.msra.mxu0 %v620
    %840 = vmatpush.bf16.msra.mxu0 %v614
    %841 = vmatmul.bf16.gmra.mxu0 %v214
    %v842 = vpop.f32.mrf.mxu0
    %v843 = vadd.f32 %v314, %v842
    %v844 = vpop.f32.mrf.mxu0
    %v845 = vadd.f32 %v314, %v844
    %846 = vdwg.mxu0
    %847 = vmatpush.bf16.msra.mxu0 %v704
    %848 = vmatpush.bf16.msra.mxu0 %v698
    %849 = vmatpush.bf16.msra.mxu0 %v692
    %850 = vmatpush.bf16.msra.mxu0 %v686
    %851 = vmatpush.bf16.msra.mxu0 %v680
    %852 = vmatpush.bf16.msra.mxu0 %v674
    %853 = vmatpush.bf16.msra.mxu0 %v668
    %854 = vmatpush.bf16.msra.mxu0 %v662
    %855 = vmatmul.bf16.gmra.mxu0 %v215
    %v856 = vpop.f32.mrf.mxu0
    %v857 = vadd.f32 %v843, %v856
    %v858 = vpop.f32.mrf.mxu0
    %v859 = vadd.f32 %v845, %v858
    %860 = vdwg.mxu0
    %861 = vmatpush.bf16.msra.mxu0 %v657
    %862 = vmatpush.bf16.msra.mxu0 %v651
    %863 = vmatpush.bf16.msra.mxu0 %v645
    %864 = vmatpush.bf16.msra.mxu0 %v639
    %865 = vmatpush.bf16.msra.mxu0 %v633
    %866 = vmatpush.bf16.msra.mxu0 %v627
    %867 = vmatpush.bf16.msra.mxu0 %v621
    %868 = vmatpush.bf16.msra.mxu0 %v615
    %869 = vmatmul.bf16.gmra.mxu0 %v214
    %v870 = vpop.f32.mrf.mxu0
    %v871 = vadd.f32 %v315, %v870
    %v872 = vpop.f32.mrf.mxu0
    %v873 = vadd.f32 %v315, %v872
    %874 = vdwg.mxu0
    %875 = vmatpush.bf16.msra.mxu0 %v705
    %876 = vmatpush.bf16.msra.mxu0 %v699
    %877 = vmatpush.bf16.msra.mxu0 %v693
    %878 = vmatpush.bf16.msra.mxu0 %v687
    %879 = vmatpush.bf16.msra.mxu0 %v681
    %880 = vmatpush.bf16.msra.mxu0 %v675
    %881 = vmatpush.bf16.msra.mxu0 %v669
    %882 = vmatpush.bf16.msra.mxu0 %v663
    %883 = vmatmul.bf16.gmra.mxu0 %v215
    %v884 = vpop.f32.mrf.mxu0
    %v885 = vadd.f32 %v871, %v884
    %v886 = vpop.f32.mrf.mxu0
    %v887 = vadd.f32 %v873, %v886
    %888 = vdwg.mxu0
    %889 = vmatpush.bf16.msra.mxu0 %v658
    %890 = vmatpush.bf16.msra.mxu0 %v652
    %891 = vmatpush.bf16.msra.mxu0 %v646
    %892 = vmatpush.bf16.msra.mxu0 %v640
    %893 = vmatpush.bf16.msra.mxu0 %v634
    %894 = vmatpush.bf16.msra.mxu0 %v628
    %895 = vmatpush.bf16.msra.mxu0 %v622
    %896 = vmatpush.bf16.msra.mxu0 %v616
    %897 = vmatmul.bf16.gmra.mxu0 %v214
    %v898 = vpop.f32.mrf.mxu0
    %v899 = vadd.f32 %v316, %v898
    %v900 = vpop.f32.mrf.mxu0
    %v901 = vadd.f32 %v316, %v900
    %902 = vdwg.mxu0
    %903 = vmatpush.bf16.msra.mxu0 %v706
    %904 = vmatpush.bf16.msra.mxu0 %v700
    %905 = vmatpush.bf16.msra.mxu0 %v694
    %906 = vmatpush.bf16.msra.mxu0 %v688
    %907 = vmatpush.bf16.msra.mxu0 %v682
    %908 = vmatpush.bf16.msra.mxu0 %v676
    %909 = vmatpush.bf16.msra.mxu0 %v670
    %910 = vmatpush.bf16.msra.mxu0 %v664
    %911 = vmatmul.bf16.gmra.mxu0 %v215
    %v912 = vpop.f32.mrf.mxu0
    %v913 = vadd.f32 %v899, %v912
    %v914 = vpop.f32.mrf.mxu0
    %v915 = vadd.f32 %v901, %v914
    %916 = vdwg.mxu0
    %917 = vmatpush.bf16.msra.mxu0 %v659
    %918 = vmatpush.bf16.msra.mxu0 %v653
    %919 = vmatpush.bf16.msra.mxu0 %v647
    %920 = vmatpush.bf16.msra.mxu0 %v641
    %921 = vmatpush.bf16.msra.mxu0 %v635
    %922 = vmatpush.bf16.msra.mxu0 %v629
    %923 = vmatpush.bf16.msra.mxu0 %v623
    %924 = vmatpush.bf16.msra.mxu0 %v617
    %925 = vmatmul.bf16.gmra.mxu0 %v214
    %v926 = vpop.f32.mrf.mxu0
    %v927 = vadd.f32 %v317, %v926
    %v928 = vpop.f32.mrf.mxu0
    %v929 = vadd.f32 %v317, %v928
    %930 = vdwg.mxu0
    %931 = vmatpush.bf16.msra.mxu0 %v707
    %932 = vmatpush.bf16.msra.mxu0 %v701
    %933 = vmatpush.bf16.msra.mxu0 %v695
    %934 = vmatpush.bf16.msra.mxu0 %v689
    %935 = vmatpush.bf16.msra.mxu0 %v683
    %936 = vmatpush.bf16.msra.mxu0 %v677
    %937 = vmatpush.bf16.msra.mxu0 %v671
    %938 = vmatpush.bf16.msra.mxu0 %v665
    %939 = vmatmul.bf16.gmra.mxu0 %v215
    %v940 = vpop.f32.mrf.mxu0
    %v941 = vadd.f32 %v927, %v940
    %v942 = vpop.f32.mrf.mxu0
    %v943 = vadd.f32 %v929, %v942
    %944 = vdwg.mxu0
    %945 = vmatpush.bf16.msra.mxu0 %v660
    %946 = vmatpush.bf16.msra.mxu0 %v654
    %947 = vmatpush.bf16.msra.mxu0 %v648
    %948 = vmatpush.bf16.msra.mxu0 %v642
    %949 = vmatpush.bf16.msra.mxu0 %v636
    %950 = vmatpush.bf16.msra.mxu0 %v630
    %951 = vmatpush.bf16.msra.mxu0 %v624
    %952 = vmatpush.bf16.msra.mxu0 %v618
    %953 = vmatmul.bf16.gmra.mxu0 %v214
    %v954 = vpop.f32.mrf.mxu0
    %v955 = vadd.f32 %v318, %v954
    %v956 = vpop.f32.mrf.mxu0
    %v957 = vadd.f32 %v318, %v956
    %958 = vdwg.mxu0
    %959 = vmatpush.bf16.msra.mxu0 %v708
    %960 = vmatpush.bf16.msra.mxu0 %v702
    %961 = vmatpush.bf16.msra.mxu0 %v696
    %962 = vmatpush.bf16.msra.mxu0 %v690
    %963 = vmatpush.bf16.msra.mxu0 %v684
    %964 = vmatpush.bf16.msra.mxu0 %v678
    %965 = vmatpush.bf16.msra.mxu0 %v672
    %966 = vmatpush.bf16.msra.mxu0 %v666
    %967 = vmatmul.bf16.gmra.mxu0 %v215
    %v968 = vpop.f32.mrf.mxu0
    %v969 = vadd.f32 %v955, %v968
    %v970 = vpop.f32.mrf.mxu0
    %v971 = vadd.f32 %v957, %v970
    %972 = vdwg.mxu0
    %v973 = vmax.f32 %v829, 0.0
    %v974 = vmax.f32 %v857, 0.0
    %v975 = vmax.f32 %v885, 0.0
    %v976 = vmax.f32 %v913, 0.0
    %v977 = vmax.f32 %v941, 0.0
    %v978 = vmax.f32 %v969, 0.0
    %v979 = vmax.f32 %v831, 0.0
    %v980 = vmax.f32 %v859, 0.0
    %v981 = vmax.f32 %v887, 0.0
    %v982 = vmax.f32 %v915, 0.0
    %v983 = vmax.f32 %v943, 0.0
    %v984 = vmax.f32 %v971, 0.0
    %v985 = vpack.c.bf16 %v974, %v973
    %v986 = vpack.c.bf16 %v976, %v975
    %v987 = vpack.c.bf16 %v978, %v977
    %v988 = vpack.c.bf16 %v980, %v979
    %v989 = vpack.c.bf16 %v982, %v981
    %v990 = vpack.c.bf16 %v984, %v983
    %v991 = vld [vmem:[%s1] sm:$0xff]
    %v992 = vld [vmem:[%s1 + $0x8] sm:$0xff]
    %v993 = vld [vmem:[%s1 + $0x10] sm:$0xff]
    %v994 = vld [vmem:[%s1 + $0x18] sm:$0xff]
    %v995 = vld [vmem:[%s1 + $0x20] sm:$0xff]
    %v996 = vld [vmem:[%s1 + $0x28] sm:$0xff]
    %v1003 = vunpack.c.l.b16 %v985
    %v1004 = vunpack.c.h.b16 %v985
    %v1005 = vunpack.c.l.b16 %v986
    %v1006 = vunpack.c.h.b16 %v986
    %v1007 = vunpack.c.l.b16 %v987
    %v1008 = vunpack.c.h.b16 %v987
    %v1009 = vunpack.c.l.b16 %v988
    %v1010 = vunpack.c.h.b16 %v988
    %v1011 = vunpack.c.l.b16 %v989
    %v1012 = vunpack.c.h.b16 %v989
    %v1013 = vunpack.c.l.b16 %v990
    %v1014 = vunpack.c.h.b16 %v990
    %v1015 = vpack.c.b16 %v1009, %v1003
    %v1016 = vpack.c.b16 %v1010, %v1004
    %v1017 = vpack.c.b16 %v1011, %v1005
    %v1018 = vpack.c.b16 %v1012, %v1006
    %v1019 = vpack.c.b16 %v1013, %v1007
    %v1020 = vpack.c.b16 %v1014, %v1008
    %v1033 = vunpack.c.l.b16 %v991
    %v1034 = vunpack.c.h.b16 %v991
    %v1035 = vunpack.c.l.b16 %v992
    %v1036 = vunpack.c.h.b16 %v992
    %v1037 = vunpack.c.l.b16 %v993
    %v1038 = vunpack.c.h.b16 %v993
    %v1039 = vunpack.c.l.b16 %v994
    %v1040 = vunpack.c.h.b16 %v994
    %v1041 = vunpack.c.l.b16 %v995
    %v1042 = vunpack.c.h.b16 %v995
    %v1043 = vunpack.c.l.b16 %v996
    %v1044 = vunpack.c.h.b16 %v996
    %v1045 = vpack.c.b16 %v1039, %v1033
    %v1046 = vpack.c.b16 %v1040, %v1034
    %v1047 = vpack.c.b16 %v1041, %v1035
    %v1048 = vpack.c.b16 %v1042, %v1036
    %v1049 = vpack.c.b16 %v1043, %v1037
    %v1050 = vpack.c.b16 %v1044, %v1038
    %v1057 = vld [vmem:[#allocation6] sm:$0xf]
    %v1058 = vld [vmem:[#allocation6 + $0x4] sm:$0xf]
    %v1059 = vld [vmem:[#allocation6 + $0x8] sm:$0xf]
    %v1060 = vld [vmem:[#allocation6 + $0xc] sm:$0xf]
    %v1061 = vld [vmem:[#allocation6 + $0x10] sm:$0xf]
    %v1062 = vld [vmem:[#allocation6 + $0x14] sm:$0xf]
    %v1063 = vld [vmem:[#allocation6 + $0x18] sm:$0xf]
    %v1064 = vld [vmem:[#allocation6 + $0x1c] sm:$0xf]
    %v1065 = vld [vmem:[#allocation6 + $0x20] sm:$0xf]
    %v1066 = vld [vmem:[#allocation6 + $0x24] sm:$0xf]
    %v1067 = vld [vmem:[#allocation6 + $0x28] sm:$0xf]
    %v1068 = vld [vmem:[#allocation6 + $0x2c] sm:$0xf]
    %v1069 = vld [vmem:[#allocation6 + $0x30] sm:$0xf]
    %v1070 = vld [vmem:[#allocation6 + $0x34] sm:$0xf]
    %v1071 = vld [vmem:[#allocation6 + $0x38] sm:$0xf]
    %v1072 = vld [vmem:[#allocation6 + $0x3c] sm:$0xf]
    %v1073 = vld [vmem:[#allocation6 + $0x40] sm:$0xf]
    %v1074 = vld [vmem:[#allocation6 + $0x44] sm:$0xf]
    %v1075 = vld [vmem:[#allocation6 + $0x48] sm:$0xf]
    %v1076 = vld [vmem:[#allocation6 + $0x4c] sm:$0xf]
    %v1077 = vld [vmem:[#allocation6 + $0x50] sm:$0xf]
    %v1078 = vld [vmem:[#allocation6 + $0x54] sm:$0xf]
    %v1079 = vld [vmem:[#allocation6 + $0x58] sm:$0xf]
    %v1080 = vld [vmem:[#allocation6 + $0x5c] sm:$0xf]
    %v1081 = vld [vmem:[#allocation6 + $0x60] sm:$0xf]
    %v1082 = vld [vmem:[#allocation6 + $0x64] sm:$0xf]
    %v1083 = vld [vmem:[#allocation6 + $0x68] sm:$0xf]
    %v1084 = vld [vmem:[#allocation6 + $0x6c] sm:$0xf]
    %v1085 = vld [vmem:[#allocation6 + $0x70] sm:$0xf]
    %v1086 = vld [vmem:[#allocation6 + $0x74] sm:$0xf]
    %v1087 = vld [vmem:[#allocation6 + $0x78] sm:$0xf]
    %v1088 = vld [vmem:[#allocation6 + $0x7c] sm:$0xf]
    %v1089 = vld [vmem:[#allocation6 + $0x80] sm:$0xf]
    %v1090 = vld [vmem:[#allocation6 + $0x84] sm:$0xf]
    %v1091 = vld [vmem:[#allocation6 + $0x88] sm:$0xf]
    %v1092 = vld [vmem:[#allocation6 + $0x8c] sm:$0xf]
    %v1093 = vld [vmem:[#allocation6 + $0x90] sm:$0xf]
    %v1094 = vld [vmem:[#allocation6 + $0x94] sm:$0xf]
    %v1095 = vld [vmem:[#allocation6 + $0x98] sm:$0xf]
    %v1096 = vld [vmem:[#allocation6 + $0x9c] sm:$0xf]
    %v1097 = vld [vmem:[#allocation6 + $0xa0] sm:$0xf]
    %v1098 = vld [vmem:[#allocation6 + $0xa4] sm:$0xf]
    %v1099 = vld [vmem:[#allocation6 + $0xa8] sm:$0xf]
    %v1100 = vld [vmem:[#allocation6 + $0xac] sm:$0xf]
    %v1101 = vld [vmem:[#allocation6 + $0xb0] sm:$0xf]
    %v1102 = vld [vmem:[#allocation6 + $0xb4] sm:$0xf]
    %v1103 = vld [vmem:[#allocation6 + $0xb8] sm:$0xf]
    %v1104 = vld [vmem:[#allocation6 + $0xbc] sm:$0xf]
    %v1105 = vld [vmem:[#allocation6 + $0xc0] sm:$0xf]
    %v1106 = vld [vmem:[#allocation6 + $0xc4] sm:$0xf]
    %v1107 = vld [vmem:[#allocation6 + $0xc8] sm:$0xf]
    %v1108 = vld [vmem:[#allocation6 + $0xcc] sm:$0xf]
    %v1109 = vld [vmem:[#allocation6 + $0xd0] sm:$0xf]
    %v1110 = vld [vmem:[#allocation6 + $0xd4] sm:$0xf]
    %v1111 = vld [vmem:[#allocation6 + $0xd8] sm:$0xf]
    %v1112 = vld [vmem:[#allocation6 + $0xdc] sm:$0xf]
    %v1113 = vld [vmem:[#allocation6 + $0xe0] sm:$0xf]
    %v1114 = vld [vmem:[#allocation6 + $0xe4] sm:$0xf]
    %v1115 = vld [vmem:[#allocation6 + $0xe8] sm:$0xf]
    %v1116 = vld [vmem:[#allocation6 + $0xec] sm:$0xf]
    %v1117 = vld [vmem:[#allocation6 + $0xf0] sm:$0xf]
    %v1118 = vld [vmem:[#allocation6 + $0xf4] sm:$0xf]
    %v1119 = vld [vmem:[#allocation6 + $0xf8] sm:$0xf]
    %v1120 = vld [vmem:[#allocation6 + $0xfc] sm:$0xf]
    %v1121 = vld [vmem:[#allocation6 + $0x100] sm:$0xf]
    %v1122 = vld [vmem:[#allocation6 + $0x104] sm:$0xf]
    %v1123 = vld [vmem:[#allocation6 + $0x108] sm:$0xf]
    %v1124 = vld [vmem:[#allocation6 + $0x10c] sm:$0xf]
    %v1125 = vld [vmem:[#allocation6 + $0x110] sm:$0xf]
    %v1126 = vld [vmem:[#allocation6 + $0x114] sm:$0xf]
    %v1127 = vld [vmem:[#allocation6 + $0x118] sm:$0xf]
    %v1128 = vld [vmem:[#allocation6 + $0x11c] sm:$0xf]
    %v1129 = vld [vmem:[#allocation6 + $0x120] sm:$0xf]
    %v1130 = vld [vmem:[#allocation6 + $0x124] sm:$0xf]
    %v1131 = vld [vmem:[#allocation6 + $0x128] sm:$0xf]
    %v1132 = vld [vmem:[#allocation6 + $0x12c] sm:$0xf]
    %v1133 = vld [vmem:[#allocation6 + $0x130] sm:$0xf]
    %v1134 = vld [vmem:[#allocation6 + $0x134] sm:$0xf]
    %v1135 = vld [vmem:[#allocation6 + $0x138] sm:$0xf]
    %v1136 = vld [vmem:[#allocation6 + $0x13c] sm:$0xf]
    %v1137 = vld [vmem:[#allocation6 + $0x140] sm:$0xf]
    %v1138 = vld [vmem:[#allocation6 + $0x144] sm:$0xf]
    %v1139 = vld [vmem:[#allocation6 + $0x148] sm:$0xf]
    %v1140 = vld [vmem:[#allocation6 + $0x14c] sm:$0xf]
    %v1141 = vld [vmem:[#allocation6 + $0x150] sm:$0xf]
    %v1142 = vld [vmem:[#allocation6 + $0x154] sm:$0xf]
    %v1143 = vld [vmem:[#allocation6 + $0x158] sm:$0xf]
    %v1144 = vld [vmem:[#allocation6 + $0x15c] sm:$0xf]
    %v1145 = vld [vmem:[#allocation6 + $0x160] sm:$0xf]
    %v1146 = vld [vmem:[#allocation6 + $0x164] sm:$0xf]
    %v1147 = vld [vmem:[#allocation6 + $0x168] sm:$0xf]
    %v1148 = vld [vmem:[#allocation6 + $0x16c] sm:$0xf]
    %v1149 = vld [vmem:[#allocation6 + $0x170] sm:$0xf]
    %v1150 = vld [vmem:[#allocation6 + $0x174] sm:$0xf]
    %v1151 = vld [vmem:[#allocation6 + $0x178] sm:$0xf]
    %v1152 = vld [vmem:[#allocation6 + $0x17c] sm:$0xf]
    %v1153 = vld [vmem:[#allocation6 + $0x180] sm:$0xf]
    %v1154 = vld [vmem:[#allocation6 + $0x184] sm:$0xf]
    %v1155 = vld [vmem:[#allocation6 + $0x188] sm:$0xf]
    %v1156 = vld [vmem:[#allocation6 + $0x18c] sm:$0xf]
    %v1157 = vld [vmem:[#allocation6 + $0x190] sm:$0xf]
    %v1158 = vld [vmem:[#allocation6 + $0x194] sm:$0xf]
    %v1159 = vld [vmem:[#allocation6 + $0x198] sm:$0xf]
    %v1160 = vld [vmem:[#allocation6 + $0x19c] sm:$0xf]
    %v1161 = vld [vmem:[#allocation6 + $0x1a0] sm:$0xf]
    %v1162 = vld [vmem:[#allocation6 + $0x1a4] sm:$0xf]
    %v1163 = vld [vmem:[#allocation6 + $0x1a8] sm:$0xf]
    %v1164 = vld [vmem:[#allocation6 + $0x1ac] sm:$0xf]
    %v1165 = vld [vmem:[#allocation6 + $0x1b0] sm:$0xf]
    %v1166 = vld [vmem:[#allocation6 + $0x1b4] sm:$0xf]
    %v1167 = vld [vmem:[#allocation6 + $0x1b8] sm:$0xf]
    %v1168 = vld [vmem:[#allocation6 + $0x1bc] sm:$0xf]
    %v1169 = vld [vmem:[#allocation6 + $0x1c0] sm:$0xf]
    %v1170 = vld [vmem:[#allocation6 + $0x1c4] sm:$0xf]
    %v1171 = vld [vmem:[#allocation6 + $0x1c8] sm:$0xf]
    %v1172 = vld [vmem:[#allocation6 + $0x1cc] sm:$0xf]
    %v1173 = vld [vmem:[#allocation6 + $0x1d0] sm:$0xf]
    %v1174 = vld [vmem:[#allocation6 + $0x1d4] sm:$0xf]
    %v1175 = vld [vmem:[#allocation6 + $0x1d8] sm:$0xf]
    %v1176 = vld [vmem:[#allocation6 + $0x1dc] sm:$0xf]
    %v1177 = vld [vmem:[#allocation6 + $0x1e0] sm:$0xf]
    %v1178 = vld [vmem:[#allocation6 + $0x1e4] sm:$0xf]
    %v1179 = vld [vmem:[#allocation6 + $0x1e8] sm:$0xf]
    %v1180 = vld [vmem:[#allocation6 + $0x1ec] sm:$0xf]
    %v1181 = vld [vmem:[#allocation6 + $0x1f0] sm:$0xf]
    %v1182 = vld [vmem:[#allocation6 + $0x1f4] sm:$0xf]
    %v1183 = vld [vmem:[#allocation6 + $0x1f8] sm:$0xf]
    %v1184 = vld [vmem:[#allocation6 + $0x1fc] sm:$0xf]
    %v1185 = vld [vmem:[#allocation6 + $0x200] sm:$0xf]
    %v1186 = vld [vmem:[#allocation6 + $0x204] sm:$0xf]
    %v1187 = vld [vmem:[#allocation6 + $0x208] sm:$0xf]
    %v1188 = vld [vmem:[#allocation6 + $0x20c] sm:$0xf]
    %v1189 = vld [vmem:[#allocation6 + $0x210] sm:$0xf]
    %v1190 = vld [vmem:[#allocation6 + $0x214] sm:$0xf]
    %v1191 = vld [vmem:[#allocation6 + $0x218] sm:$0xf]
    %v1192 = vld [vmem:[#allocation6 + $0x21c] sm:$0xf]
    %v1193 = vld [vmem:[#allocation6 + $0x220] sm:$0xf]
    %v1194 = vld [vmem:[#allocation6 + $0x224] sm:$0xf]
    %v1195 = vld [vmem:[#allocation6 + $0x228] sm:$0xf]
    %v1196 = vld [vmem:[#allocation6 + $0x22c] sm:$0xf]
    %v1197 = vld [vmem:[#allocation6 + $0x230] sm:$0xf]
    %v1198 = vld [vmem:[#allocation6 + $0x234] sm:$0xf]
    %v1199 = vld [vmem:[#allocation6 + $0x238] sm:$0xf]
    %v1200 = vld [vmem:[#allocation6 + $0x23c] sm:$0xf]
    %v1201 = vld [vmem:[#allocation6 + $0x240] sm:$0xf]
    %v1202 = vld [vmem:[#allocation6 + $0x244] sm:$0xf]
    %v1203 = vld [vmem:[#allocation6 + $0x248] sm:$0xf]
    %v1204 = vld [vmem:[#allocation6 + $0x24c] sm:$0xf]
    %v1205 = vld [vmem:[#allocation6 + $0x250] sm:$0xf]
    %v1206 = vld [vmem:[#allocation6 + $0x254] sm:$0xf]
    %v1207 = vld [vmem:[#allocation6 + $0x258] sm:$0xf]
    %v1208 = vld [vmem:[#allocation6 + $0x25c] sm:$0xf]
    %v1209 = vld [vmem:[#allocation6 + $0x260] sm:$0xf]
    %v1210 = vld [vmem:[#allocation6 + $0x264] sm:$0xf]
    %v1211 = vld [vmem:[#allocation6 + $0x268] sm:$0xf]
    %v1212 = vld [vmem:[#allocation6 + $0x26c] sm:$0xf]
    %v1213 = vld [vmem:[#allocation6 + $0x270] sm:$0xf]
    %v1214 = vld [vmem:[#allocation6 + $0x274] sm:$0xf]
    %v1215 = vld [vmem:[#allocation6 + $0x278] sm:$0xf]
    %v1216 = vld [vmem:[#allocation6 + $0x27c] sm:$0xf]
    %v1217 = vld [vmem:[#allocation6 + $0x280] sm:$0xf]
    %v1218 = vld [vmem:[#allocation6 + $0x284] sm:$0xf]
    %v1219 = vld [vmem:[#allocation6 + $0x288] sm:$0xf]
    %v1220 = vld [vmem:[#allocation6 + $0x28c] sm:$0xf]
    %v1221 = vld [vmem:[#allocation6 + $0x290] sm:$0xf]
    %v1222 = vld [vmem:[#allocation6 + $0x294] sm:$0xf]
    %v1223 = vld [vmem:[#allocation6 + $0x298] sm:$0xf]
    %v1224 = vld [vmem:[#allocation6 + $0x29c] sm:$0xf]
    %v1225 = vld [vmem:[#allocation6 + $0x2a0] sm:$0xf]
    %v1226 = vld [vmem:[#allocation6 + $0x2a4] sm:$0xf]
    %v1227 = vld [vmem:[#allocation6 + $0x2a8] sm:$0xf]
    %v1228 = vld [vmem:[#allocation6 + $0x2ac] sm:$0xf]
    %v1229 = vld [vmem:[#allocation6 + $0x2b0] sm:$0xf]
    %v1230 = vld [vmem:[#allocation6 + $0x2b4] sm:$0xf]
    %v1231 = vld [vmem:[#allocation6 + $0x2b8] sm:$0xf]
    %v1232 = vld [vmem:[#allocation6 + $0x2bc] sm:$0xf]
    %v1233 = vld [vmem:[#allocation6 + $0x2c0] sm:$0xf]
    %v1234 = vld [vmem:[#allocation6 + $0x2c4] sm:$0xf]
    %v1235 = vld [vmem:[#allocation6 + $0x2c8] sm:$0xf]
    %v1236 = vld [vmem:[#allocation6 + $0x2cc] sm:$0xf]
    %v1237 = vld [vmem:[#allocation6 + $0x2d0] sm:$0xf]
    %v1238 = vld [vmem:[#allocation6 + $0x2d4] sm:$0xf]
    %v1239 = vld [vmem:[#allocation6 + $0x2d8] sm:$0xf]
    %v1240 = vld [vmem:[#allocation6 + $0x2dc] sm:$0xf]
    %v1241 = vld [vmem:[#allocation6 + $0x2e0] sm:$0xf]
    %v1242 = vld [vmem:[#allocation6 + $0x2e4] sm:$0xf]
    %v1243 = vld [vmem:[#allocation6 + $0x2e8] sm:$0xf]
    %v1244 = vld [vmem:[#allocation6 + $0x2ec] sm:$0xf]
    %v1245 = vld [vmem:[#allocation6 + $0x2f0] sm:$0xf]
    %v1246 = vld [vmem:[#allocation6 + $0x2f4] sm:$0xf]
    %v1247 = vld [vmem:[#allocation6 + $0x2f8] sm:$0xf]
    %v1248 = vld [vmem:[#allocation6 + $0x2fc] sm:$0xf]
    %v1250 = vperm.slane %v77, 0
    %v1444 = vunpack.c.l.b16 %v1057
    %v1445 = vunpack.c.l.b16 %v1058
    %v1446 = vunpack.c.l.b16 %v1059
    %v1447 = vunpack.c.l.b16 %v1060
    %v1448 = vunpack.c.l.b16 %v1061
    %v1449 = vunpack.c.l.b16 %v1062
    %v1450 = vunpack.c.l.b16 %v1063
    %v1451 = vunpack.c.l.b16 %v1064
    %v1452 = vunpack.c.l.b16 %v1065
    %v1453 = vunpack.c.l.b16 %v1066
    %v1454 = vunpack.c.l.b16 %v1067
    %v1455 = vunpack.c.l.b16 %v1068
    %v1456 = vunpack.c.l.b16 %v1069
    %v1457 = vunpack.c.l.b16 %v1070
    %v1458 = vunpack.c.l.b16 %v1071
    %v1459 = vunpack.c.l.b16 %v1072
    %v1460 = vunpack.c.l.b16 %v1073
    %v1461 = vunpack.c.l.b16 %v1074
    %v1462 = vunpack.c.l.b16 %v1075
    %v1463 = vunpack.c.l.b16 %v1076
    %v1464 = vunpack.c.l.b16 %v1077
    %v1465 = vunpack.c.l.b16 %v1078
    %v1466 = vunpack.c.l.b16 %v1079
    %v1467 = vunpack.c.l.b16 %v1080
    %v1468 = vunpack.c.l.b16 %v1081
    %v1469 = vunpack.c.l.b16 %v1082
    %v1470 = vunpack.c.l.b16 %v1083
    %v1471 = vunpack.c.l.b16 %v1084
    %v1472 = vunpack.c.l.b16 %v1085
    %v1473 = vunpack.c.l.b16 %v1086
    %v1474 = vunpack.c.l.b16 %v1087
    %v1475 = vunpack.c.l.b16 %v1088
    %v1476 = vunpack.c.l.b16 %v1089
    %v1477 = vunpack.c.l.b16 %v1090
    %v1478 = vunpack.c.l.b16 %v1091
    %v1479 = vunpack.c.l.b16 %v1092
    %v1480 = vunpack.c.l.b16 %v1093
    %v1481 = vunpack.c.l.b16 %v1094
    %v1482 = vunpack.c.l.b16 %v1095
    %v1483 = vunpack.c.l.b16 %v1096
    %v1484 = vunpack.c.l.b16 %v1097
    %v1485 = vunpack.c.l.b16 %v1098
    %v1486 = vunpack.c.l.b16 %v1099
    %v1487 = vunpack.c.l.b16 %v1100
    %v1488 = vunpack.c.l.b16 %v1101
    %v1489 = vunpack.c.l.b16 %v1102
    %v1490 = vunpack.c.l.b16 %v1103
    %v1491 = vunpack.c.l.b16 %v1104
    %v1492 = vunpack.c.l.b16 %v1105
    %v1493 = vunpack.c.l.b16 %v1106
    %v1494 = vunpack.c.l.b16 %v1107
    %v1495 = vunpack.c.l.b16 %v1108
    %v1496 = vunpack.c.l.b16 %v1109
    %v1497 = vunpack.c.l.b16 %v1110
    %v1498 = vunpack.c.l.b16 %v1111
    %v1499 = vunpack.c.l.b16 %v1112
    %v1500 = vunpack.c.l.b16 %v1113
    %v1501 = vunpack.c.l.b16 %v1114
    %v1502 = vunpack.c.l.b16 %v1115
    %v1503 = vunpack.c.l.b16 %v1116
    %v1504 = vunpack.c.l.b16 %v1117
    %v1505 = vunpack.c.l.b16 %v1118
    %v1506 = vunpack.c.l.b16 %v1119
    %v1507 = vunpack.c.l.b16 %v1120
    %v1508 = vunpack.c.l.b16 %v1121
    %v1509 = vunpack.c.l.b16 %v1122
    %v1510 = vunpack.c.l.b16 %v1123
    %v1511 = vunpack.c.l.b16 %v1124
    %v1512 = vunpack.c.l.b16 %v1125
    %v1513 = vunpack.c.l.b16 %v1126
    %v1514 = vunpack.c.l.b16 %v1127
    %v1515 = vunpack.c.l.b16 %v1128
    %v1516 = vunpack.c.l.b16 %v1129
    %v1517 = vunpack.c.l.b16 %v1130
    %v1518 = vunpack.c.l.b16 %v1131
    %v1519 = vunpack.c.l.b16 %v1132
    %v1520 = vunpack.c.l.b16 %v1133
    %v1521 = vunpack.c.l.b16 %v1134
    %v1522 = vunpack.c.l.b16 %v1135
    %v1523 = vunpack.c.l.b16 %v1136
    %v1524 = vunpack.c.l.b16 %v1137
    %v1525 = vunpack.c.l.b16 %v1138
    %v1526 = vunpack.c.l.b16 %v1139
    %v1527 = vunpack.c.l.b16 %v1140
    %v1528 = vunpack.c.l.b16 %v1141
    %v1529 = vunpack.c.l.b16 %v1142
    %v1530 = vunpack.c.l.b16 %v1143
    %v1531 = vunpack.c.l.b16 %v1144
    %v1532 = vunpack.c.l.b16 %v1145
    %v1533 = vunpack.c.l.b16 %v1146
    %v1534 = vunpack.c.l.b16 %v1147
    %v1535 = vunpack.c.l.b16 %v1148
    %v1536 = vunpack.c.l.b16 %v1149
    %v1537 = vunpack.c.l.b16 %v1150
    %v1538 = vunpack.c.l.b16 %v1151
    %v1539 = vunpack.c.l.b16 %v1152
    %v1540 = vunpack.c.l.b16 %v1153
    %v1541 = vunpack.c.l.b16 %v1154
    %v1542 = vunpack.c.l.b16 %v1155
    %v1543 = vunpack.c.l.b16 %v1156
    %v1544 = vunpack.c.l.b16 %v1157
    %v1545 = vunpack.c.l.b16 %v1158
    %v1546 = vunpack.c.l.b16 %v1159
    %v1547 = vunpack.c.l.b16 %v1160
    %v1548 = vunpack.c.l.b16 %v1161
    %v1549 = vunpack.c.l.b16 %v1162
    %v1550 = vunpack.c.l.b16 %v1163
    %v1551 = vunpack.c.l.b16 %v1164
    %v1552 = vunpack.c.l.b16 %v1165
    %v1553 = vunpack.c.l.b16 %v1166
    %v1554 = vunpack.c.l.b16 %v1167
    %v1555 = vunpack.c.l.b16 %v1168
    %v1556 = vunpack.c.l.b16 %v1169
    %v1557 = vunpack.c.l.b16 %v1170
    %v1558 = vunpack.c.l.b16 %v1171
    %v1559 = vunpack.c.l.b16 %v1172
    %v1560 = vunpack.c.l.b16 %v1173
    %v1561 = vunpack.c.l.b16 %v1174
    %v1562 = vunpack.c.l.b16 %v1175
    %v1563 = vunpack.c.l.b16 %v1176
    %v1564 = vunpack.c.l.b16 %v1177
    %v1565 = vunpack.c.l.b16 %v1178
    %v1566 = vunpack.c.l.b16 %v1179
    %v1567 = vunpack.c.l.b16 %v1180
    %v1568 = vunpack.c.l.b16 %v1181
    %v1569 = vunpack.c.l.b16 %v1182
    %v1570 = vunpack.c.l.b16 %v1183
    %v1571 = vunpack.c.l.b16 %v1184
    %v1572 = vunpack.c.l.b16 %v1185
    %v1573 = vunpack.c.l.b16 %v1186
    %v1574 = vunpack.c.l.b16 %v1187
    %v1575 = vunpack.c.l.b16 %v1188
    %v1576 = vunpack.c.l.b16 %v1189
    %v1577 = vunpack.c.l.b16 %v1190
    %v1578 = vunpack.c.l.b16 %v1191
    %v1579 = vunpack.c.l.b16 %v1192
    %v1580 = vunpack.c.l.b16 %v1193
    %v1581 = vunpack.c.l.b16 %v1194
    %v1582 = vunpack.c.l.b16 %v1195
    %v1583 = vunpack.c.l.b16 %v1196
    %v1584 = vunpack.c.l.b16 %v1197
    %v1585 = vunpack.c.l.b16 %v1198
    %v1586 = vunpack.c.l.b16 %v1199
    %v1587 = vunpack.c.l.b16 %v1200
    %v1588 = vunpack.c.l.b16 %v1201
    %v1589 = vunpack.c.l.b16 %v1202
    %v1590 = vunpack.c.l.b16 %v1203
    %v1591 = vunpack.c.l.b16 %v1204
    %v1592 = vunpack.c.l.b16 %v1205
    %v1593 = vunpack.c.l.b16 %v1206
    %v1594 = vunpack.c.l.b16 %v1207
    %v1595 = vunpack.c.l.b16 %v1208
    %v1596 = vunpack.c.l.b16 %v1209
    %v1597 = vunpack.c.l.b16 %v1210
    %v1598 = vunpack.c.l.b16 %v1211
    %v1599 = vunpack.c.l.b16 %v1212
    %v1600 = vunpack.c.l.b16 %v1213
    %v1601 = vunpack.c.l.b16 %v1214
    %v1602 = vunpack.c.l.b16 %v1215
    %v1603 = vunpack.c.l.b16 %v1216
    %v1604 = vunpack.c.l.b16 %v1217
    %v1605 = vunpack.c.l.b16 %v1218
    %v1606 = vunpack.c.l.b16 %v1219
    %v1607 = vunpack.c.l.b16 %v1220
    %v1608 = vunpack.c.l.b16 %v1221
    %v1609 = vunpack.c.l.b16 %v1222
    %v1610 = vunpack.c.l.b16 %v1223
    %v1611 = vunpack.c.l.b16 %v1224
    %v1612 = vunpack.c.l.b16 %v1225
    %v1613 = vunpack.c.l.b16 %v1226
    %v1614 = vunpack.c.l.b16 %v1227
    %v1615 = vunpack.c.l.b16 %v1228
    %v1616 = vunpack.c.l.b16 %v1229
    %v1617 = vunpack.c.l.b16 %v1230
    %v1618 = vunpack.c.l.b16 %v1231
    %v1619 = vunpack.c.l.b16 %v1232
    %v1620 = vunpack.c.l.b16 %v1233
    %v1621 = vunpack.c.l.b16 %v1234
    %v1622 = vunpack.c.l.b16 %v1235
    %v1623 = vunpack.c.l.b16 %v1236
    %v1624 = vunpack.c.l.b16 %v1237
    %v1625 = vunpack.c.l.b16 %v1238
    %v1626 = vunpack.c.l.b16 %v1239
    %v1627 = vunpack.c.l.b16 %v1240
    %v1628 = vunpack.c.l.b16 %v1241
    %v1629 = vunpack.c.l.b16 %v1242
    %v1630 = vunpack.c.l.b16 %v1243
    %v1631 = vunpack.c.l.b16 %v1244
    %v1632 = vunpack.c.l.b16 %v1245
    %v1633 = vunpack.c.l.b16 %v1246
    %v1634 = vunpack.c.l.b16 %v1247
    %v1635 = vunpack.c.l.b16 %v1248
    %v1636 = vpack.c.b16 %v1445, %v1444
    %v1637 = vpack.c.b16 %v1447, %v1446
    %v1638 = vpack.c.b16 %v1449, %v1448
    %v1639 = vpack.c.b16 %v1451, %v1450
    %v1640 = vpack.c.b16 %v1453, %v1452
    %v1641 = vpack.c.b16 %v1455, %v1454
    %v1642 = vpack.c.b16 %v1457, %v1456
    %v1643 = vpack.c.b16 %v1459, %v1458
    %v1644 = vpack.c.b16 %v1461, %v1460
    %v1645 = vpack.c.b16 %v1463, %v1462
    %v1646 = vpack.c.b16 %v1465, %v1464
    %v1647 = vpack.c.b16 %v1467, %v1466
    %v1648 = vpack.c.b16 %v1469, %v1468
    %v1649 = vpack.c.b16 %v1471, %v1470
    %v1650 = vpack.c.b16 %v1473, %v1472
    %v1651 = vpack.c.b16 %v1475, %v1474
    %v1652 = vpack.c.b16 %v1477, %v1476
    %v1653 = vpack.c.b16 %v1479, %v1478
    %v1654 = vpack.c.b16 %v1481, %v1480
    %v1655 = vpack.c.b16 %v1483, %v1482
    %v1656 = vpack.c.b16 %v1485, %v1484
    %v1657 = vpack.c.b16 %v1487, %v1486
    %v1658 = vpack.c.b16 %v1489, %v1488
    %v1659 = vpack.c.b16 %v1491, %v1490
    %v1660 = vpack.c.b16 %v1493, %v1492
    %v1661 = vpack.c.b16 %v1495, %v1494
    %v1662 = vpack.c.b16 %v1497, %v1496
    %v1663 = vpack.c.b16 %v1499, %v1498
    %v1664 = vpack.c.b16 %v1501, %v1500
    %v1665 = vpack.c.b16 %v1503, %v1502
    %v1666 = vpack.c.b16 %v1505, %v1504
    %v1667 = vpack.c.b16 %v1507, %v1506
    %v1668 = vpack.c.b16 %v1509, %v1508
    %v1669 = vpack.c.b16 %v1511, %v1510
    %v1670 = vpack.c.b16 %v1513, %v1512
    %v1671 = vpack.c.b16 %v1515, %v1514
    %v1672 = vpack.c.b16 %v1517, %v1516
    %v1673 = vpack.c.b16 %v1519, %v1518
    %v1674 = vpack.c.b16 %v1521, %v1520
    %v1675 = vpack.c.b16 %v1523, %v1522
    %v1676 = vpack.c.b16 %v1525, %v1524
    %v1677 = vpack.c.b16 %v1527, %v1526
    %v1678 = vpack.c.b16 %v1529, %v1528
    %v1679 = vpack.c.b16 %v1531, %v1530
    %v1680 = vpack.c.b16 %v1533, %v1532
    %v1681 = vpack.c.b16 %v1535, %v1534
    %v1682 = vpack.c.b16 %v1537, %v1536
    %v1683 = vpack.c.b16 %v1539, %v1538
    %v1684 = vpack.c.b16 %v1541, %v1540
    %v1685 = vpack.c.b16 %v1543, %v1542
    %v1686 = vpack.c.b16 %v1545, %v1544
    %v1687 = vpack.c.b16 %v1547, %v1546
    %v1688 = vpack.c.b16 %v1549, %v1548
    %v1689 = vpack.c.b16 %v1551, %v1550
    %v1690 = vpack.c.b16 %v1553, %v1552
    %v1691 = vpack.c.b16 %v1555, %v1554
    %v1692 = vpack.c.b16 %v1557, %v1556
    %v1693 = vpack.c.b16 %v1559, %v1558
    %v1694 = vpack.c.b16 %v1561, %v1560
    %v1695 = vpack.c.b16 %v1563, %v1562
    %v1696 = vpack.c.b16 %v1565, %v1564
    %v1697 = vpack.c.b16 %v1567, %v1566
    %v1698 = vpack.c.b16 %v1569, %v1568
    %v1699 = vpack.c.b16 %v1571, %v1570
    %v1700 = vpack.c.b16 %v1573, %v1572
    %v1701 = vpack.c.b16 %v1575, %v1574
    %v1702 = vpack.c.b16 %v1577, %v1576
    %v1703 = vpack.c.b16 %v1579, %v1578
    %v1704 = vpack.c.b16 %v1581, %v1580
    %v1705 = vpack.c.b16 %v1583, %v1582
    %v1706 = vpack.c.b16 %v1585, %v1584
    %v1707 = vpack.c.b16 %v1587, %v1586
    %v1708 = vpack.c.b16 %v1589, %v1588
    %v1709 = vpack.c.b16 %v1591, %v1590
    %v1710 = vpack.c.b16 %v1593, %v1592
    %v1711 = vpack.c.b16 %v1595, %v1594
    %v1712 = vpack.c.b16 %v1597, %v1596
    %v1713 = vpack.c.b16 %v1599, %v1598
    %v1714 = vpack.c.b16 %v1601, %v1600
    %v1715 = vpack.c.b16 %v1603, %v1602
    %v1716 = vpack.c.b16 %v1605, %v1604
    %v1717 = vpack.c.b16 %v1607, %v1606
    %v1718 = vpack.c.b16 %v1609, %v1608
    %v1719 = vpack.c.b16 %v1611, %v1610
    %v1720 = vpack.c.b16 %v1613, %v1612
    %v1721 = vpack.c.b16 %v1615, %v1614
    %v1722 = vpack.c.b16 %v1617, %v1616
    %v1723 = vpack.c.b16 %v1619, %v1618
    %v1724 = vpack.c.b16 %v1621, %v1620
    %v1725 = vpack.c.b16 %v1623, %v1622
    %v1726 = vpack.c.b16 %v1625, %v1624
    %v1727 = vpack.c.b16 %v1627, %v1626
    %v1728 = vpack.c.b16 %v1629, %v1628
    %v1729 = vpack.c.b16 %v1631, %v1630
    %v1730 = vpack.c.b16 %v1633, %v1632
    %v1731 = vpack.c.b16 %v1635, %v1634
    %1828 = vmatpush.bf16.msra.mxu0 %v1643
    %1829 = vmatpush.bf16.msra.mxu0 %v1642
    %1830 = vmatpush.bf16.msra.mxu0 %v1641
    %1831 = vmatpush.bf16.msra.mxu0 %v1640
    %1832 = vmatpush.bf16.msra.mxu0 %v1639
    %1833 = vmatpush.bf16.msra.mxu0 %v1638
    %1834 = vmatpush.bf16.msra.mxu0 %v1637
    %1835 = vmatpush.bf16.msra.mxu0 %v1636
    %1836 = vmatmul.bf16.gmra.mxu0 %v1015
    %v1837 = vpop.f32.mrf.mxu0
    %v1838 = vadd.f32 %v1250, %v1837
    %v1839 = vpop.f32.mrf.mxu0
    %v1840 = vadd.f32 %v1250, %v1839
    %1841 = vdwg.mxu0
    %1842 = vmatpush.bf16.msra.mxu0 %v1651
    %1843 = vmatpush.bf16.msra.mxu0 %v1650
    %1844 = vmatpush.bf16.msra.mxu0 %v1649
    %1845 = vmatpush.bf16.msra.mxu0 %v1648
    %1846 = vmatpush.bf16.msra.mxu0 %v1647
    %1847 = vmatpush.bf16.msra.mxu0 %v1646
    %1848 = vmatpush.bf16.msra.mxu0 %v1645
    %1849 = vmatpush.bf16.msra.mxu0 %v1644
    %1850 = vmatmul.bf16.gmra.mxu0 %v1016
    %v1851 = vpop.f32.mrf.mxu0
    %v1852 = vadd.f32 %v1838, %v1851
    %v1853 = vpop.f32.mrf.mxu0
    %v1854 = vadd.f32 %v1840, %v1853
    %1855 = vdwg.mxu0
    %1856 = vmatpush.bf16.msra.mxu0 %v1659
    %1857 = vmatpush.bf16.msra.mxu0 %v1658
    %1858 = vmatpush.bf16.msra.mxu0 %v1657
    %1859 = vmatpush.bf16.msra.mxu0 %v1656
    %1860 = vmatpush.bf16.msra.mxu0 %v1655
    %1861 = vmatpush.bf16.msra.mxu0 %v1654
    %1862 = vmatpush.bf16.msra.mxu0 %v1653
    %1863 = vmatpush.bf16.msra.mxu0 %v1652
    %1864 = vmatmul.bf16.gmra.mxu0 %v1017
    %v1865 = vpop.f32.mrf.mxu0
    %v1866 = vadd.f32 %v1852, %v1865
    %v1867 = vpop.f32.mrf.mxu0
    %v1868 = vadd.f32 %v1854, %v1867
    %1869 = vdwg.mxu0
    %1870 = vmatpush.bf16.msra.mxu0 %v1667
    %1871 = vmatpush.bf16.msra.mxu0 %v1666
    %1872 = vmatpush.bf16.msra.mxu0 %v1665
    %1873 = vmatpush.bf16.msra.mxu0 %v1664
    %1874 = vmatpush.bf16.msra.mxu0 %v1663
    %1875 = vmatpush.bf16.msra.mxu0 %v1662
    %1876 = vmatpush.bf16.msra.mxu0 %v1661
    %1877 = vmatpush.bf16.msra.mxu0 %v1660
    %1878 = vmatmul.bf16.gmra.mxu0 %v1018
    %v1879 = vpop.f32.mrf.mxu0
    %v1880 = vadd.f32 %v1866, %v1879
    %v1881 = vpop.f32.mrf.mxu0
    %v1882 = vadd.f32 %v1868, %v1881
    %1883 = vdwg.mxu0
    %1884 = vmatpush.bf16.msra.mxu0 %v1675
    %1885 = vmatpush.bf16.msra.mxu0 %v1674
    %1886 = vmatpush.bf16.msra.mxu0 %v1673
    %1887 = vmatpush.bf16.msra.mxu0 %v1672
    %1888 = vmatpush.bf16.msra.mxu0 %v1671
    %1889 = vmatpush.bf16.msra.mxu0 %v1670
    %1890 = vmatpush.bf16.msra.mxu0 %v1669
    %1891 = vmatpush.bf16.msra.mxu0 %v1668
    %1892 = vmatmul.bf16.gmra.mxu0 %v1019
    %v1893 = vpop.f32.mrf.mxu0
    %v1894 = vadd.f32 %v1880, %v1893
    %v1895 = vpop.f32.mrf.mxu0
    %v1896 = vadd.f32 %v1882, %v1895
    %1897 = vdwg.mxu0
    %1898 = vmatpush.bf16.msra.mxu0 %v1683
    %1899 = vmatpush.bf16.msra.mxu0 %v1682
    %1900 = vmatpush.bf16.msra.mxu0 %v1681
    %1901 = vmatpush.bf16.msra.mxu0 %v1680
    %1902 = vmatpush.bf16.msra.mxu0 %v1679
    %1903 = vmatpush.bf16.msra.mxu0 %v1678
    %1904 = vmatpush.bf16.msra.mxu0 %v1677
    %1905 = vmatpush.bf16.msra.mxu0 %v1676
    %1906 = vmatmul.bf16.gmra.mxu0 %v1020
    %v1907 = vpop.f32.mrf.mxu0
    %v1908 = vadd.f32 %v1894, %v1907
    %v1909 = vpop.f32.mrf.mxu0
    %v1910 = vadd.f32 %v1896, %v1909
    %1911 = vdwg.mxu0
    %1912 = vmatpush.bf16.msra.mxu0 %v1691
    %1913 = vmatpush.bf16.msra.mxu0 %v1690
    %1914 = vmatpush.bf16.msra.mxu0 %v1689
    %1915 = vmatpush.bf16.msra.mxu0 %v1688
    %1916 = vmatpush.bf16.msra.mxu0 %v1687
    %1917 = vmatpush.bf16.msra.mxu0 %v1686
    %1918 = vmatpush.bf16.msra.mxu0 %v1685
    %1919 = vmatpush.bf16.msra.mxu0 %v1684
    %1920 = vmatmul.bf16.gmra.mxu0 %v1045
    %v1921 = vpop.f32.mrf.mxu0
    %v1922 = vadd.f32 %v1908, %v1921
    %v1923 = vpop.f32.mrf.mxu0
    %v1924 = vadd.f32 %v1910, %v1923
    %1925 = vdwg.mxu0
    %1926 = vmatpush.bf16.msra.mxu0 %v1699
    %1927 = vmatpush.bf16.msra.mxu0 %v1698
    %1928 = vmatpush.bf16.msra.mxu0 %v1697
    %1929 = vmatpush.bf16.msra.mxu0 %v1696
    %1930 = vmatpush.bf16.msra.mxu0 %v1695
    %1931 = vmatpush.bf16.msra.mxu0 %v1694
    %1932 = vmatpush.bf16.msra.mxu0 %v1693
    %1933 = vmatpush.bf16.msra.mxu0 %v1692
    %1934 = vmatmul.bf16.gmra.mxu0 %v1046
    %v1935 = vpop.f32.mrf.mxu0
    %v1936 = vadd.f32 %v1922, %v1935
    %v1937 = vpop.f32.mrf.mxu0
    %v1938 = vadd.f32 %v1924, %v1937
    %1939 = vdwg.mxu0
    %1940 = vmatpush.bf16.msra.mxu0 %v1707
    %1941 = vmatpush.bf16.msra.mxu0 %v1706
    %1942 = vmatpush.bf16.msra.mxu0 %v1705
    %1943 = vmatpush.bf16.msra.mxu0 %v1704
    %1944 = vmatpush.bf16.msra.mxu0 %v1703
    %1945 = vmatpush.bf16.msra.mxu0 %v1702
    %1946 = vmatpush.bf16.msra.mxu0 %v1701
    %1947 = vmatpush.bf16.msra.mxu0 %v1700
    %1948 = vmatmul.bf16.gmra.mxu0 %v1047
    %v1949 = vpop.f32.mrf.mxu0
    %v1950 = vadd.f32 %v1936, %v1949
    %v1951 = vpop.f32.mrf.mxu0
    %v1952 = vadd.f32 %v1938, %v1951
    %1953 = vdwg.mxu0
    %1954 = vmatpush.bf16.msra.mxu0 %v1715
    %1955 = vmatpush.bf16.msra.mxu0 %v1714
    %1956 = vmatpush.bf16.msra.mxu0 %v1713
    %1957 = vmatpush.bf16.msra.mxu0 %v1712
    %1958 = vmatpush.bf16.msra.mxu0 %v1711
    %1959 = vmatpush.bf16.msra.mxu0 %v1710
    %1960 = vmatpush.bf16.msra.mxu0 %v1709
    %1961 = vmatpush.bf16.msra.mxu0 %v1708
    %1962 = vmatmul.bf16.gmra.mxu0 %v1048
    %v1963 = vpop.f32.mrf.mxu0
    %v1964 = vadd.f32 %v1950, %v1963
    %v1965 = vpop.f32.mrf.mxu0
    %v1966 = vadd.f32 %v1952, %v1965
    %1967 = vdwg.mxu0
    %1968 = vmatpush.bf16.msra.mxu0 %v1723
    %1969 = vmatpush.bf16.msra.mxu0 %v1722
    %1970 = vmatpush.bf16.msra.mxu0 %v1721
    %1971 = vmatpush.bf16.msra.mxu0 %v1720
    %1972 = vmatpush.bf16.msra.mxu0 %v1719
    %1973 = vmatpush.bf16.msra.mxu0 %v1718
    %1974 = vmatpush.bf16.msra.mxu0 %v1717
    %1975 = vmatpush.bf16.msra.mxu0 %v1716
    %1976 = vmatmul.bf16.gmra.mxu0 %v1049
    %v1977 = vpop.f32.mrf.mxu0
    %v1978 = vadd.f32 %v1964, %v1977
    %v1979 = vpop.f32.mrf.mxu0
    %v1980 = vadd.f32 %v1966, %v1979
    %1981 = vdwg.mxu0
    %1982 = vmatpush.bf16.msra.mxu0 %v1731
    %1983 = vmatpush.bf16.msra.mxu0 %v1730
    %1984 = vmatpush.bf16.msra.mxu0 %v1729
    %1985 = vmatpush.bf16.msra.mxu0 %v1728
    %1986 = vmatpush.bf16.msra.mxu0 %v1727
    %1987 = vmatpush.bf16.msra.mxu0 %v1726
    %1988 = vmatpush.bf16.msra.mxu0 %v1725
    %1989 = vmatpush.bf16.msra.mxu0 %v1724
    %1990 = vmatmul.bf16.gmra.mxu0 %v1050
    %v1991 = vpop.f32.mrf.mxu0
    %v1992 = vadd.f32 %v1978, %v1991
    %v1993 = vpop.f32.mrf.mxu0
    %v1994 = vadd.f32 %v1980, %v1993
    %1995 = vdwg.mxu0
    %1996 = vst [vmem:[%s7] sm:$0xff] %v1992
    %1997 = vst [vmem:[%s7 + $0x8] sm:$0xff] %v1994
    %v1998 = vlaneseq
    %v1999 = vand.u32 %v1998, 127
    %vm2000 = vcmp.lt.s32.totalorder %v1999, 4
    %v2001 = vsel %vm2000, %v1992, -1e+30
    %v2002 = vsel %vm2000, %v1994, -1e+30
    %2003 = vmax.xlane.f32.xlu0 %v2001
    %v2004 = vpop.xlane.xlu0 %2003
    %2005 = vmax.xlane.f32.xlu0 %v2002
    %v2006 = vpop.xlane.xlu0 %2005
    %v2007 = vsub.f32 %v2001, %v2004
    %v2008 = vsub.f32 %v2002, %v2006
    %v2009 = vmul.f32 %v2007, 1.442695
    %v2010 = vpow.pop %v2009
    %v2011 = vmul.f32 %v2008, 1.442695
    %v2012 = vpow.pop %v2011
    %2013 = vadd.xlane.f32.xlu0 %v2010
    %v2014 = vpop.xlane.xlu0 %2013
    %2015 = vadd.xlane.f32.xlu0 %v2012
    %v2016 = vpop.xlane.xlu0 %2015
    %v2017 = vlog2.pop %v2014
    %v2018 = vmul.f32 %v2017, 0.6931472
    %v2019 = vlog2.pop %v2016
    %v2020 = vmul.f32 %v2019, 0.6931472
    %v2021 = vadd.f32 %v2004, %v2018
    %v2022 = vadd.f32 %v2006, %v2020
    %v2023 = vld [vmem:[%s2] sm:$0xff]
    %v2024 = vld [vmem:[%s2 + $0x8] sm:$0xff]
    %2025 = vset.pattern.permute.xlu0 0
    %2026 = vperm.xlu0 %2025, %v2023
    %v2027 = vpop.permute.xlu0 %2026
    %2028 = vset.pattern.permute.xlu0 0
    %2029 = vperm.xlu0 %2028, %v2024
    %v2030 = vpop.permute.xlu0 %2029
    %vm2031 = vcmp.eq.s32.totalorder %v1999, %v2027
    %vm2032 = vcmp.eq.s32.totalorder %v1999, %v2030
    %v2033 = vsel %vm2031, %v1992, 0.0
    %v2034 = vsel %vm2032, %v1994, 0.0
    %2035 = vadd.xlane.f32.xlu0 %v2033
    %v2036 = vpop.xlane.xlu0 %2035
    %2037 = vadd.xlane.f32.xlu0 %v2034
    %v2038 = vpop.xlane.xlu0 %2037
    %v2039 = vsub.f32 %v2021, %v2036
    %v2040 = vsub.f32 %v2022, %v2038
    %v2041 = vlaneseq
    %v2042 = vshrl.u32 %v2041, 7
    %v2043 = vadd.s32 %v2042, 8
    %s2044 = smul.u32 0, 16
    %v2045 = vstv %s2044
    %v2046 = vadd.s32 %v2042, %v2045
    %v2047 = vadd.s32 %v2043, %v2045
    %vm2048 = vcmp.lt.s32.totalorder %v2046, 8
    %vm2049 = vcmp.lt.s32.totalorder %v2047, 8
    %v2050 = vsel %vm2048, %v2039, 0.0
    %v2051 = vsel %vm2049, %v2040, 0.0
    %2052 = vst [vmem:[%s8] sm:$0xff] %v2050
    %2053 = vst [vmem:[%s8 + $0x8] sm:$0xff] %v2051
    // Predicated region
    $region42: #{nn_forward.1} parent=1 // pred_check
      _
    $region43: #{nn_forward.1} parent=1 // pred_check_branch
      %2055 = sbr.rel (0) target = $region45
    $region44: #{nn_forward.1} parent=1 // pred_region
      _
    $region45: #{nn_forward.1} parent=1 // pred_fallthru
      _
    // Predicated region
    $region46: #{nn_forward.1} parent=1 // pred_check
      _
    $region47: #{nn_forward.1} parent=1 // pred_check_branch
      %2057 = sbr.rel (0) target = $region49
    $region48: #{nn_forward.1} parent=1 // pred_region
      _
    $region49: #{nn_forward.1} parent=1 // pred_fallthru
      _
    // Predicated region
    $region50: #{nn_forward.1} parent=1 // pred_check
      _
    $region51: #{nn_forward.1} parent=1 // pred_check_branch
      %2059 = sbr.rel (0) target = $region53
    $region52: #{nn_forward.1} parent=1 // pred_region
      _
    $region53: #{nn_forward.1} parent=1 // pred_fallthru
      _
    // Predicated region
    $region54: #{nn_forward.1} parent=1 // pred_check
      _
    $region55: #{nn_forward.1} parent=1 // pred_check_branch
      %2061 = sbr.rel (0) target = $region57
    $region56: #{nn_forward.1} parent=1 // pred_region
      _
    $region57: #{nn_forward.1} parent=1 // pred_fallthru
      _
    %2062 = vsyncpa [#allocation3], 1
    %2063 = vsyncpa [#allocation5], 1

</llo_original>
